<compile_context>
chip_gen: v7x
topology: tpu7x:2x2x1
jax: 0.10.0
libtpu: 0.0.40
codegen_flags: <defaults>
</compile_context>

<pallas_src>
import jax
import jax.numpy as jnp
from jax.experimental import pallas as pl
from jax.experimental.pallas import tpu as pltpu


def make_lstm_kernel(n_layers, hidden, seq_len):
    """Builds the Pallas kernel body for a fixed (static) configuration."""
    H = hidden

    def kernel(*refs):
        # --- unpack refs (inputs, outputs, scratch) --------------------------
        x_ref, h0_ref, c0_ref, scale_ref, shift_ref = refs[0:5]
        p = 5
        layer_refs = []
        for _ in range(n_layers):
            layer_refs.append((refs[p], refs[p + 1], refs[p + 2]))  # WihT, WhhT, b
            p += 3
        fcw_ref, fcb_ref = refs[p], refs[p + 1]
        p += 2
        out_ref, hn_ref, cn_ref = refs[p], refs[p + 1], refs[p + 2]
        gx_scratch, h_scratch = refs[p + 3], refs[p + 4]

        # Hoisted once: per-lane affine that finishes sigmoid on i/f/o lanes
        # (tanh(z/2)*0.5 + 0.5) and is identity on the g lanes.
        gate_scale = scale_ref[...]            # (1, 4H)
        gate_shift = shift_ref[...]            # (1, 4H)

        # --- stacked LSTM layers (sequential over layers and time) ----------
        for l in range(n_layers):
            wih_ref, whh_ref, b_ref = layer_refs[l]
            whh = whh_ref[...]                 # (H, 4H), columns pre-scaled

            if l == 0:
                seq_in = x_ref[...]            # (T, in_dim)
            else:
                seq_in = h_scratch[...]        # (T, H) from previous layer

            # Hoisted input projection for the whole sequence -> VMEM scratch,
            # so per-step reads are plain row loads (vld) off the XLU path.
            gx_scratch[...] = (jnp.dot(seq_in, wih_ref[...],
                                       preferred_element_type=jnp.float32)
                               + b_ref[...])   # (T, 4H)

            h = h0_ref[pl.ds(l, 1), :]         # (1, H)
            c = c0_ref[pl.ds(l, 1), :]         # (1, H)

            for t in range(seq_len):           # fully unrolled (static, T=8)
                gates = gx_scratch[pl.ds(t, 1), :] + jnp.dot(
                    h, whh, preferred_element_type=jnp.float32)  # (1, 4H)

                # One EUP tanh for all four gates; pre-scale already folded
                # into the weights, affine finishes the sigmoid lanes.
                a = jnp.tanh(gates)
                act = a * gate_scale + gate_shift

                i_g = act[:, 0:H]
                f_g = act[:, H:2 * H]
                g_g = act[:, 2 * H:3 * H]
                o_g = act[:, 3 * H:4 * H]

                c = f_g * c + i_g * g_g
                h = o_g * jnp.tanh(c)

                # Off the dependent chain: row store into VMEM scratch.
                h_scratch[pl.ds(t, 1), :] = h

            hn_ref[pl.ds(l, 1), :] = h
            cn_ref[pl.ds(l, 1), :] = c

        # --- final Linear layer (dropout == identity in eval), lane-dense ---
        out_ref[...] = (jnp.dot(h_scratch[...], fcw_ref[...],
                                preferred_element_type=jnp.float32)
                        + fcb_ref[...])        # (T, OUT_PAD)

    return kernel


def lstm_forward(x, hn, params, *, n_layers, hidden, output_size):
    """Equivalent of LSTM.forward(x, hn): returns (output, (h_n, c_n))."""
    h0, c0 = hn
    seq_len, _ = x.shape
    H = hidden
    out_pad = -(-output_size // 128) * 128        # lane-dense output width

    # Column scale folding the sigmoid 0.5 pre-scale into i/f/o gate columns
    # (PyTorch gate order: i, f, g, o).
    col_scale = jnp.concatenate([
        jnp.full((2 * H,), 0.5, jnp.float32),     # i, f
        jnp.ones((H,), jnp.float32),              # g
        jnp.full((H,), 0.5, jnp.float32),         # o
    ])
    gate_scale = jnp.concatenate([
        jnp.full((1, 2 * H), 0.5, jnp.float32),
        jnp.ones((1, H), jnp.float32),
        jnp.full((1, H), 0.5, jnp.float32),
    ], axis=1)
    gate_shift = jnp.concatenate([
        jnp.full((1, 2 * H), 0.5, jnp.float32),
        jnp.zeros((1, H), jnp.float32),
        jnp.full((1, H), 0.5, jnp.float32),
    ], axis=1)

    inputs = [x.astype(jnp.float32),
              h0.reshape(n_layers, H).astype(jnp.float32),
              c0.reshape(n_layers, H).astype(jnp.float32),
              gate_scale, gate_shift]
    for l in range(n_layers):
        wih, whh, bih, bhh = params[f"lstm_l{l}"]
        inputs += [
            wih.T.astype(jnp.float32) * col_scale,
            whh.T.astype(jnp.float32) * col_scale,
            ((bih + bhh).astype(jnp.float32) * col_scale).reshape(1, -1),
        ]
    fc_w, fc_b = params["fc"]
    fc_wT_pad = jnp.zeros((H, out_pad), jnp.float32)
    fc_wT_pad = fc_wT_pad.at[:, :output_size].set(fc_w.T.astype(jnp.float32))
    fc_b_pad = jnp.zeros((1, out_pad), jnp.float32)
    fc_b_pad = fc_b_pad.at[:, :output_size].set(
        fc_b.reshape(1, -1).astype(jnp.float32))
    inputs += [fc_wT_pad, fc_b_pad]

    out_shapes = (
        jax.ShapeDtypeStruct((seq_len, out_pad), jnp.float32),
        jax.ShapeDtypeStruct((n_layers, H), jnp.float32),
        jax.ShapeDtypeStruct((n_layers, H), jnp.float32),
    )
    vmem = pl.BlockSpec(memory_space=pltpu.MemorySpace.VMEM)

    kernel = make_lstm_kernel(n_layers, H, seq_len)
    out_padded, h_n, c_n = pl.pallas_call(
        kernel,
        out_shape=out_shapes,
        in_specs=[vmem] * len(inputs),
        out_specs=(vmem, vmem, vmem),
        scratch_shapes=[
            pltpu.VMEM((seq_len, 4 * H), jnp.float32),   # gates_x scratch
            pltpu.VMEM((seq_len, H), jnp.float32),       # per-layer h outputs
        ],
    )(*inputs)

    out = out_padded[:, :output_size]
    return out, (h_n.reshape(n_layers, 1, H), c_n.reshape(n_layers, 1, H))


def ref_forward(x, hn, params, *, n_layers, hidden, output_size):
    """Pure-JAX reference matching PyTorch nn.LSTM + nn.Linear semantics."""
    h0, c0 = hn
    seq = x
    h_list, c_list = [], []
    for l in range(n_layers):
        wih, whh, bih, bhh = params[f"lstm_l{l}"]
        h, c = h0[l, 0], c0[l, 0]
        outs = []
        for t in range(seq.shape[0]):
            g = seq[t] @ wih.T + bih + h @ whh.T + bhh
            i_g = jax.nn.sigmoid(g[0:hidden])
            f_g = jax.nn.sigmoid(g[hidden:2 * hidden])
            g_g = jnp.tanh(g[2 * hidden:3 * hidden])
            o_g = jax.nn.sigmoid(g[3 * hidden:4 * hidden])
            c = f_g * c + i_g * g_g
            h = o_g * jnp.tanh(c)
            outs.append(h)
        seq = jnp.stack(outs)
        h_list.append(h)
        c_list.append(c)
    fc_w, fc_b = params["fc"]
    out = seq @ fc_w.T + fc_b
    return out, (jnp.stack(h_list)[:, None, :], jnp.stack(c_list)[:, None, :])


def init_params(key, input_size, hidden, n_layers, output_size):
    """Deterministic init, same shapes as the PyTorch module's parameters."""
    params = {}
    bound = 1.0 / jnp.sqrt(hidden)
    for l in range(n_layers):
        in_dim = input_size if l == 0 else hidden
        key, k1, k2, k3, k4 = jax.random.split(key, 5)
        params[f"lstm_l{l}"] = (
            jax.random.uniform(k1, (4 * hidden, in_dim), jnp.float32, -bound, bound),
            jax.random.uniform(k2, (4 * hidden, hidden), jnp.float32, -bound, bound),
            jax.random.uniform(k3, (4 * hidden,), jnp.float32, -bound, bound),
            jax.random.uniform(k4, (4 * hidden,), jnp.float32, -bound, bound),
        )
    key, k1, k2 = jax.random.split(key, 3)
    params["fc"] = (
        jax.random.uniform(k1, (output_size, hidden), jnp.float32, -bound, bound),
        jax.random.uniform(k2, (output_size,), jnp.float32, -bound, bound),
    )
    return params


if __name__ == "__main__":
    # Module config: LSTM(input_size, output_size, n_features, n_layers)
    input_size, output_size, n_features, n_layers = 8, 1, 32, 2
    seq_len = 8

    key = jax.random.PRNGKey(0)
    key, kx = jax.random.split(key)
    x = jax.random.normal(kx, (seq_len, input_size), jnp.float32)
    # init_hidden(): zeros of shape (n_layers, 1, hidden_dim)
    h0 = jnp.zeros((n_layers, 1, n_features), jnp.float32)
    c0 = jnp.zeros((n_layers, 1, n_features), jnp.float32)

    params = init_params(key, input_size, n_features, n_layers, output_size)

    out, (h_n, c_n) = lstm_forward(
        x, (h0, c0), params,
        n_layers=n_layers, hidden=n_features, output_size=output_size)
    jax.block_until_ready(out)

    # Validate against a pure-JAX reference of the PyTorch math.
    ref_out, (ref_h, ref_c) = ref_forward(
        x, (h0, c0), params,
        n_layers=n_layers, hidden=n_features, output_size=output_size)
    assert jnp.allclose(out, ref_out, atol=1e-4, rtol=1e-4)
    assert jnp.allclose(h_n, ref_h, atol=1e-4, rtol=1e-4)
    assert jnp.allclose(c_n, ref_c, atol=1e-4, rtol=1e-4)

    print("KERNEL_OK")
</pallas_src>

<mosaic_0001>
module attributes {stable_mosaic.version = 11 : i64} {
  func.func @kernel(%arg0: memref<8x8xf32, #tpu.memory_space<vmem>>, %arg1: memref<2x32xf32, #tpu.memory_space<vmem>>, %arg2: memref<2x32xf32, #tpu.memory_space<vmem>>, %arg3: memref<1x128xf32, #tpu.memory_space<vmem>>, %arg4: memref<1x128xf32, #tpu.memory_space<vmem>>, %arg5: memref<8x128xf32, #tpu.memory_space<vmem>>, %arg6: memref<32x128xf32, #tpu.memory_space<vmem>>, %arg7: memref<1x128xf32, #tpu.memory_space<vmem>>, %arg8: memref<32x128xf32, #tpu.memory_space<vmem>>, %arg9: memref<32x128xf32, #tpu.memory_space<vmem>>, %arg10: memref<1x128xf32, #tpu.memory_space<vmem>>, %arg11: memref<32x128xf32, #tpu.memory_space<vmem>>, %arg12: memref<1x128xf32, #tpu.memory_space<vmem>>, %arg13: memref<8x128xf32, #tpu.memory_space<vmem>>, %arg14: memref<2x32xf32, #tpu.memory_space<vmem>>, %arg15: memref<2x32xf32, #tpu.memory_space<vmem>>, %arg16: memref<8x128xf32, #tpu.memory_space<vmem>>, %arg17: memref<8x32xf32, #tpu.memory_space<vmem>>) attributes {dimension_semantics = [], scalar_prefetch = 0 : i64, scratch_operands = 2 : i64, tpu.core_type = #tpu.core_type<tc>} {
    %c0 = arith.constant 0 : index
    %c0_0 = arith.constant 0 : index
    %0 = vector.load %arg3[%c0, %c0_0] : memref<1x128xf32, #tpu.memory_space<vmem>>, vector<1x128xf32>
    %c0_1 = arith.constant 0 : index
    %c0_2 = arith.constant 0 : index
    %1 = vector.load %arg4[%c0_1, %c0_2] : memref<1x128xf32, #tpu.memory_space<vmem>>, vector<1x128xf32>
    %c0_3 = arith.constant 0 : index
    %c0_4 = arith.constant 0 : index
    %2 = vector.load %arg6[%c0_3, %c0_4] : memref<32x128xf32, #tpu.memory_space<vmem>>, vector<32x128xf32>
    %c0_5 = arith.constant 0 : index
    %c0_6 = arith.constant 0 : index
    %3 = vector.load %arg0[%c0_5, %c0_6] : memref<8x8xf32, #tpu.memory_space<vmem>>, vector<8x8xf32>
    %c0_7 = arith.constant 0 : index
    %c0_8 = arith.constant 0 : index
    %4 = vector.load %arg5[%c0_7, %c0_8] : memref<8x128xf32, #tpu.memory_space<vmem>>, vector<8x128xf32>
    %cst = arith.constant dense<0.000000e+00> : vector<8x128xf32>
    %5 = tpu.matmul %3, %4, %cst {dimension_numbers = #tpu.dot_dimension_numbers<[1], [0], [0], [1], [0, 0, 1, 1], [], []>} : vector<8x8xf32>, vector<8x128xf32>, vector<8x128xf32> -> vector<8x128xf32>
    %c0_9 = arith.constant 0 : index
    %c0_10 = arith.constant 0 : index
    %6 = vector.load %arg7[%c0_9, %c0_10] : memref<1x128xf32, #tpu.memory_space<vmem>>, vector<1x128xf32>
    %7 = vector.broadcast %6 : vector<1x128xf32> to vector<8x128xf32>
    %8 = arith.addf %5, %7 : vector<8x128xf32>
    %c0_11 = arith.constant 0 : index
    %c0_12 = arith.constant 0 : index
    %9 = vector.load %arg16[%c0_11, %c0_12] : memref<8x128xf32, #tpu.memory_space<vmem>>, vector<8x128xf32>
    tpu.vector_store %arg16[%c0_11, %c0_12], %8 {strides = array<i32>} : memref<8x128xf32, #tpu.memory_space<vmem>>, vector<8x128xf32>,
    %c0_13 = arith.constant 0 : index
    %c0_14 = arith.constant 0 : index
    %10 = vector.load %arg1[%c0_13, %c0_14] : memref<2x32xf32, #tpu.memory_space<vmem>>, vector<1x32xf32>
    %c0_15 = arith.constant 0 : index
    %c0_16 = arith.constant 0 : index
    %11 = vector.load %arg2[%c0_15, %c0_16] : memref<2x32xf32, #tpu.memory_space<vmem>>, vector<1x32xf32>
    %c0_17 = arith.constant 0 : index
    %c0_18 = arith.constant 0 : index
    %12 = vector.load %arg16[%c0_17, %c0_18] : memref<8x128xf32, #tpu.memory_space<vmem>>, vector<1x128xf32>
    %cst_19 = arith.constant dense<0.000000e+00> : vector<1x128xf32>
    %13 = tpu.matmul %10, %2, %cst_19 {dimension_numbers = #tpu.dot_dimension_numbers<[1], [0], [0], [1], [0, 0, 1, 1], [], []>} : vector<1x32xf32>, vector<32x128xf32>, vector<1x128xf32> -> vector<1x128xf32>
    %14 = arith.addf %12, %13 : vector<1x128xf32>
    %15 = math.tanh %14 : vector<1x128xf32>
    %16 = arith.mulf %15, %0 : vector<1x128xf32>
    %17 = arith.addf %16, %1 : vector<1x128xf32>
    %18 = vector.extract_strided_slice %17 {offsets = [0, 0], sizes = [1, 32], strides = [1, 1]} : vector<1x128xf32> to vector<1x32xf32>
    %19 = vector.extract_strided_slice %17 {offsets = [0, 32], sizes = [1, 32], strides = [1, 1]} : vector<1x128xf32> to vector<1x32xf32>
    %20 = vector.extract_strided_slice %17 {offsets = [0, 64], sizes = [1, 32], strides = [1, 1]} : vector<1x128xf32> to vector<1x32xf32>
    %21 = vector.extract_strided_slice %17 {offsets = [0, 96], sizes = [1, 32], strides = [1, 1]} : vector<1x128xf32> to vector<1x32xf32>
    %22 = arith.mulf %19, %11 : vector<1x32xf32>
    %23 = arith.mulf %18, %20 : vector<1x32xf32>
    %24 = arith.addf %22, %23 : vector<1x32xf32>
    %25 = math.tanh %24 : vector<1x32xf32>
    %26 = arith.mulf %21, %25 : vector<1x32xf32>
    %c0_20 = arith.constant 0 : index
    %c0_21 = arith.constant 0 : index
    %27 = vector.load %arg17[%c0_20, %c0_21] : memref<8x32xf32, #tpu.memory_space<vmem>>, vector<1x32xf32>
    tpu.vector_store %arg17[%c0_20, %c0_21], %26 {strides = array<i32>} : memref<8x32xf32, #tpu.memory_space<vmem>>, vector<1x32xf32>,
    %c1 = arith.constant 1 : index
    %c0_22 = arith.constant 0 : index
    %28 = vector.load %arg16[%c1, %c0_22] : memref<8x128xf32, #tpu.memory_space<vmem>>, vector<1x128xf32>
    %cst_23 = arith.constant dense<0.000000e+00> : vector<1x128xf32>
    %29 = tpu.matmul %26, %2, %cst_23 {dimension_numbers = #tpu.dot_dimension_numbers<[1], [0], [0], [1], [0, 0, 1, 1], [], []>} : vector<1x32xf32>, vector<32x128xf32>, vector<1x128xf32> -> vector<1x128xf32>
    %30 = arith.addf %28, %29 : vector<1x128xf32>
    %31 = math.tanh %30 : vector<1x128xf32>
    %32 = arith.mulf %31, %0 : vector<1x128xf32>
    %33 = arith.addf %32, %1 : vector<1x128xf32>
    %34 = vector.extract_strided_slice %33 {offsets = [0, 0], sizes = [1, 32], strides = [1, 1]} : vector<1x128xf32> to vector<1x32xf32>
    %35 = vector.extract_strided_slice %33 {offsets = [0, 32], sizes = [1, 32], strides = [1, 1]} : vector<1x128xf32> to vector<1x32xf32>
    %36 = vector.extract_strided_slice %33 {offsets = [0, 64], sizes = [1, 32], strides = [1, 1]} : vector<1x128xf32> to vector<1x32xf32>
    %37 = vector.extract_strided_slice %33 {offsets = [0, 96], sizes = [1, 32], strides = [1, 1]} : vector<1x128xf32> to vector<1x32xf32>
    %38 = arith.mulf %35, %24 : vector<1x32xf32>
    %39 = arith.mulf %34, %36 : vector<1x32xf32>
    %40 = arith.addf %38, %39 : vector<1x32xf32>
    %41 = math.tanh %40 : vector<1x32xf32>
    %42 = arith.mulf %37, %41 : vector<1x32xf32>
    %c1_24 = arith.constant 1 : index
    %c0_25 = arith.constant 0 : index
    %43 = vector.load %arg17[%c1_24, %c0_25] : memref<8x32xf32, #tpu.memory_space<vmem>>, vector<1x32xf32>
    tpu.vector_store %arg17[%c1_24, %c0_25], %42 {strides = array<i32>} : memref<8x32xf32, #tpu.memory_space<vmem>>, vector<1x32xf32>,
    %c2 = arith.constant 2 : index
    %c0_26 = arith.constant 0 : index
    %44 = vector.load %arg16[%c2, %c0_26] : memref<8x128xf32, #tpu.memory_space<vmem>>, vector<1x128xf32>
    %cst_27 = arith.constant dense<0.000000e+00> : vector<1x128xf32>
    %45 = tpu.matmul %42, %2, %cst_27 {dimension_numbers = #tpu.dot_dimension_numbers<[1], [0], [0], [1], [0, 0, 1, 1], [], []>} : vector<1x32xf32>, vector<32x128xf32>, vector<1x128xf32> -> vector<1x128xf32>
    %46 = arith.addf %44, %45 : vector<1x128xf32>
    %47 = math.tanh %46 : vector<1x128xf32>
    %48 = arith.mulf %47, %0 : vector<1x128xf32>
    %49 = arith.addf %48, %1 : vector<1x128xf32>
    %50 = vector.extract_strided_slice %49 {offsets = [0, 0], sizes = [1, 32], strides = [1, 1]} : vector<1x128xf32> to vector<1x32xf32>
    %51 = vector.extract_strided_slice %49 {offsets = [0, 32], sizes = [1, 32], strides = [1, 1]} : vector<1x128xf32> to vector<1x32xf32>
    %52 = vector.extract_strided_slice %49 {offsets = [0, 64], sizes = [1, 32], strides = [1, 1]} : vector<1x128xf32> to vector<1x32xf32>
    %53 = vector.extract_strided_slice %49 {offsets = [0, 96], sizes = [1, 32], strides = [1, 1]} : vector<1x128xf32> to vector<1x32xf32>
    %54 = arith.mulf %51, %40 : vector<1x32xf32>
    %55 = arith.mulf %50, %52 : vector<1x32xf32>
    %56 = arith.addf %54, %55 : vector<1x32xf32>
    %57 = math.tanh %56 : vector<1x32xf32>
    %58 = arith.mulf %53, %57 : vector<1x32xf32>
    %c2_28 = arith.constant 2 : index
    %c0_29 = arith.constant 0 : index
    %59 = vector.load %arg17[%c2_28, %c0_29] : memref<8x32xf32, #tpu.memory_space<vmem>>, vector<1x32xf32>
    tpu.vector_store %arg17[%c2_28, %c0_29], %58 {strides = array<i32>} : memref<8x32xf32, #tpu.memory_space<vmem>>, vector<1x32xf32>,
    %c3 = arith.constant 3 : index
    %c0_30 = arith.constant 0 : index
    %60 = vector.load %arg16[%c3, %c0_30] : memref<8x128xf32, #tpu.memory_space<vmem>>, vector<1x128xf32>
    %cst_31 = arith.constant dense<0.000000e+00> : vector<1x128xf32>
    %61 = tpu.matmul %58, %2, %cst_31 {dimension_numbers = #tpu.dot_dimension_numbers<[1], [0], [0], [1], [0, 0, 1, 1], [], []>} : vector<1x32xf32>, vector<32x128xf32>, vector<1x128xf32> -> vector<1x128xf32>
    %62 = arith.addf %60, %61 : vector<1x128xf32>
    %63 = math.tanh %62 : vector<1x128xf32>
    %64 = arith.mulf %63, %0 : vector<1x128xf32>
    %65 = arith.addf %64, %1 : vector<1x128xf32>
    %66 = vector.extract_strided_slice %65 {offsets = [0, 0], sizes = [1, 32], strides = [1, 1]} : vector<1x128xf32> to vector<1x32xf32>
    %67 = vector.extract_strided_slice %65 {offsets = [0, 32], sizes = [1, 32], strides = [1, 1]} : vector<1x128xf32> to vector<1x32xf32>
    %68 = vector.extract_strided_slice %65 {offsets = [0, 64], sizes = [1, 32], strides = [1, 1]} : vector<1x128xf32> to vector<1x32xf32>
    %69 = vector.extract_strided_slice %65 {offsets = [0, 96], sizes = [1, 32], strides = [1, 1]} : vector<1x128xf32> to vector<1x32xf32>
    %70 = arith.mulf %67, %56 : vector<1x32xf32>
    %71 = arith.mulf %66, %68 : vector<1x32xf32>
    %72 = arith.addf %70, %71 : vector<1x32xf32>
    %73 = math.tanh %72 : vector<1x32xf32>
    %74 = arith.mulf %69, %73 : vector<1x32xf32>
    %c3_32 = arith.constant 3 : index
    %c0_33 = arith.constant 0 : index
    %75 = vector.load %arg17[%c3_32, %c0_33] : memref<8x32xf32, #tpu.memory_space<vmem>>, vector<1x32xf32>
    tpu.vector_store %arg17[%c3_32, %c0_33], %74 {strides = array<i32>} : memref<8x32xf32, #tpu.memory_space<vmem>>, vector<1x32xf32>,
    %c4 = arith.constant 4 : index
    %c0_34 = arith.constant 0 : index
    %76 = vector.load %arg16[%c4, %c0_34] : memref<8x128xf32, #tpu.memory_space<vmem>>, vector<1x128xf32>
    %cst_35 = arith.constant dense<0.000000e+00> : vector<1x128xf32>
    %77 = tpu.matmul %74, %2, %cst_35 {dimension_numbers = #tpu.dot_dimension_numbers<[1], [0], [0], [1], [0, 0, 1, 1], [], []>} : vector<1x32xf32>, vector<32x128xf32>, vector<1x128xf32> -> vector<1x128xf32>
    %78 = arith.addf %76, %77 : vector<1x128xf32>
    %79 = math.tanh %78 : vector<1x128xf32>
    %80 = arith.mulf %79, %0 : vector<1x128xf32>
    %81 = arith.addf %80, %1 : vector<1x128xf32>
    %82 = vector.extract_strided_slice %81 {offsets = [0, 0], sizes = [1, 32], strides = [1, 1]} : vector<1x128xf32> to vector<1x32xf32>
    %83 = vector.extract_strided_slice %81 {offsets = [0, 32], sizes = [1, 32], strides = [1, 1]} : vector<1x128xf32> to vector<1x32xf32>
    %84 = vector.extract_strided_slice %81 {offsets = [0, 64], sizes = [1, 32], strides = [1, 1]} : vector<1x128xf32> to vector<1x32xf32>
    %85 = vector.extract_strided_slice %81 {offsets = [0, 96], sizes = [1, 32], strides = [1, 1]} : vector<1x128xf32> to vector<1x32xf32>
    %86 = arith.mulf %83, %72 : vector<1x32xf32>
    %87 = arith.mulf %82, %84 : vector<1x32xf32>
    %88 = arith.addf %86, %87 : vector<1x32xf32>
    %89 = math.tanh %88 : vector<1x32xf32>
    %90 = arith.mulf %85, %89 : vector<1x32xf32>
    %c4_36 = arith.constant 4 : index
    %c0_37 = arith.constant 0 : index
    %91 = vector.load %arg17[%c4_36, %c0_37] : memref<8x32xf32, #tpu.memory_space<vmem>>, vector<1x32xf32>
    tpu.vector_store %arg17[%c4_36, %c0_37], %90 {strides = array<i32>} : memref<8x32xf32, #tpu.memory_space<vmem>>, vector<1x32xf32>,
    %c5 = arith.constant 5 : index
    %c0_38 = arith.constant 0 : index
    %92 = vector.load %arg16[%c5, %c0_38] : memref<8x128xf32, #tpu.memory_space<vmem>>, vector<1x128xf32>
    %cst_39 = arith.constant dense<0.000000e+00> : vector<1x128xf32>
    %93 = tpu.matmul %90, %2, %cst_39 {dimension_numbers = #tpu.dot_dimension_numbers<[1], [0], [0], [1], [0, 0, 1, 1], [], []>} : vector<1x32xf32>, vector<32x128xf32>, vector<1x128xf32> -> vector<1x128xf32>
    %94 = arith.addf %92, %93 : vector<1x128xf32>
    %95 = math.tanh %94 : vector<1x128xf32>
    %96 = arith.mulf %95, %0 : vector<1x128xf32>
    %97 = arith.addf %96, %1 : vector<1x128xf32>
    %98 = vector.extract_strided_slice %97 {offsets = [0, 0], sizes = [1, 32], strides = [1, 1]} : vector<1x128xf32> to vector<1x32xf32>
    %99 = vector.extract_strided_slice %97 {offsets = [0, 32], sizes = [1, 32], strides = [1, 1]} : vector<1x128xf32> to vector<1x32xf32>
    %100 = vector.extract_strided_slice %97 {offsets = [0, 64], sizes = [1, 32], strides = [1, 1]} : vector<1x128xf32> to vector<1x32xf32>
    %101 = vector.extract_strided_slice %97 {offsets = [0, 96], sizes = [1, 32], strides = [1, 1]} : vector<1x128xf32> to vector<1x32xf32>
    %102 = arith.mulf %99, %88 : vector<1x32xf32>
    %103 = arith.mulf %98, %100 : vector<1x32xf32>
    %104 = arith.addf %102, %103 : vector<1x32xf32>
    %105 = math.tanh %104 : vector<1x32xf32>
    %106 = arith.mulf %101, %105 : vector<1x32xf32>
    %c5_40 = arith.constant 5 : index
    %c0_41 = arith.constant 0 : index
    %107 = vector.load %arg17[%c5_40, %c0_41] : memref<8x32xf32, #tpu.memory_space<vmem>>, vector<1x32xf32>
    tpu.vector_store %arg17[%c5_40, %c0_41], %106 {strides = array<i32>} : memref<8x32xf32, #tpu.memory_space<vmem>>, vector<1x32xf32>,
    %c6 = arith.constant 6 : index
    %c0_42 = arith.constant 0 : index
    %108 = vector.load %arg16[%c6, %c0_42] : memref<8x128xf32, #tpu.memory_space<vmem>>, vector<1x128xf32>
    %cst_43 = arith.constant dense<0.000000e+00> : vector<1x128xf32>
    %109 = tpu.matmul %106, %2, %cst_43 {dimension_numbers = #tpu.dot_dimension_numbers<[1], [0], [0], [1], [0, 0, 1, 1], [], []>} : vector<1x32xf32>, vector<32x128xf32>, vector<1x128xf32> -> vector<1x128xf32>
    %110 = arith.addf %108, %109 : vector<1x128xf32>
    %111 = math.tanh %110 : vector<1x128xf32>
    %112 = arith.mulf %111, %0 : vector<1x128xf32>
    %113 = arith.addf %112, %1 : vector<1x128xf32>
    %114 = vector.extract_strided_slice %113 {offsets = [0, 0], sizes = [1, 32], strides = [1, 1]} : vector<1x128xf32> to vector<1x32xf32>
    %115 = vector.extract_strided_slice %113 {offsets = [0, 32], sizes = [1, 32], strides = [1, 1]} : vector<1x128xf32> to vector<1x32xf32>
    %116 = vector.extract_strided_slice %113 {offsets = [0, 64], sizes = [1, 32], strides = [1, 1]} : vector<1x128xf32> to vector<1x32xf32>
    %117 = vector.extract_strided_slice %113 {offsets = [0, 96], sizes = [1, 32], strides = [1, 1]} : vector<1x128xf32> to vector<1x32xf32>
    %118 = arith.mulf %115, %104 : vector<1x32xf32>
    %119 = arith.mulf %114, %116 : vector<1x32xf32>
    %120 = arith.addf %118, %119 : vector<1x32xf32>
    %121 = math.tanh %120 : vector<1x32xf32>
    %122 = arith.mulf %117, %121 : vector<1x32xf32>
    %c6_44 = arith.constant 6 : index
    %c0_45 = arith.constant 0 : index
    %123 = vector.load %arg17[%c6_44, %c0_45] : memref<8x32xf32, #tpu.memory_space<vmem>>, vector<1x32xf32>
    tpu.vector_store %arg17[%c6_44, %c0_45], %122 {strides = array<i32>} : memref<8x32xf32, #tpu.memory_space<vmem>>, vector<1x32xf32>,
    %c7 = arith.constant 7 : index
    %c0_46 = arith.constant 0 : index
    %124 = vector.load %arg16[%c7, %c0_46] : memref<8x128xf32, #tpu.memory_space<vmem>>, vector<1x128xf32>
    %cst_47 = arith.constant dense<0.000000e+00> : vector<1x128xf32>
    %125 = tpu.matmul %122, %2, %cst_47 {dimension_numbers = #tpu.dot_dimension_numbers<[1], [0], [0], [1], [0, 0, 1, 1], [], []>} : vector<1x32xf32>, vector<32x128xf32>, vector<1x128xf32> -> vector<1x128xf32>
    %126 = arith.addf %124, %125 : vector<1x128xf32>
    %127 = math.tanh %126 : vector<1x128xf32>
    %128 = arith.mulf %127, %0 : vector<1x128xf32>
    %129 = arith.addf %128, %1 : vector<1x128xf32>
    %130 = vector.extract_strided_slice %129 {offsets = [0, 0], sizes = [1, 32], strides = [1, 1]} : vector<1x128xf32> to vector<1x32xf32>
    %131 = vector.extract_strided_slice %129 {offsets = [0, 32], sizes = [1, 32], strides = [1, 1]} : vector<1x128xf32> to vector<1x32xf32>
    %132 = vector.extract_strided_slice %129 {offsets = [0, 64], sizes = [1, 32], strides = [1, 1]} : vector<1x128xf32> to vector<1x32xf32>
    %133 = vector.extract_strided_slice %129 {offsets = [0, 96], sizes = [1, 32], strides = [1, 1]} : vector<1x128xf32> to vector<1x32xf32>
    %134 = arith.mulf %131, %120 : vector<1x32xf32>
    %135 = arith.mulf %130, %132 : vector<1x32xf32>
    %136 = arith.addf %134, %135 : vector<1x32xf32>
    %137 = math.tanh %136 : vector<1x32xf32>
    %138 = arith.mulf %133, %137 : vector<1x32xf32>
    %c7_48 = arith.constant 7 : index
    %c0_49 = arith.constant 0 : index
    %139 = vector.load %arg17[%c7_48, %c0_49] : memref<8x32xf32, #tpu.memory_space<vmem>>, vector<1x32xf32>
    tpu.vector_store %arg17[%c7_48, %c0_49], %138 {strides = array<i32>} : memref<8x32xf32, #tpu.memory_space<vmem>>, vector<1x32xf32>,
    %c0_50 = arith.constant 0 : index
    %c0_51 = arith.constant 0 : index
    %140 = vector.load %arg14[%c0_50, %c0_51] : memref<2x32xf32, #tpu.memory_space<vmem>>, vector<1x32xf32>
    tpu.vector_store %arg14[%c0_50, %c0_51], %138 {strides = array<i32>} : memref<2x32xf32, #tpu.memory_space<vmem>>, vector<1x32xf32>,
    %c0_52 = arith.constant 0 : index
    %c0_53 = arith.constant 0 : index
    %141 = vector.load %arg15[%c0_52, %c0_53] : memref<2x32xf32, #tpu.memory_space<vmem>>, vector<1x32xf32>
    tpu.vector_store %arg15[%c0_52, %c0_53], %136 {strides = array<i32>} : memref<2x32xf32, #tpu.memory_space<vmem>>, vector<1x32xf32>,
    %c0_54 = arith.constant 0 : index
    %c0_55 = arith.constant 0 : index
    %142 = vector.load %arg9[%c0_54, %c0_55] : memref<32x128xf32, #tpu.memory_space<vmem>>, vector<32x128xf32>
    %c0_56 = arith.constant 0 : index
    %c0_57 = arith.constant 0 : index
    %143 = vector.load %arg17[%c0_56, %c0_57] : memref<8x32xf32, #tpu.memory_space<vmem>>, vector<8x32xf32>
    %c0_58 = arith.constant 0 : index
    %c0_59 = arith.constant 0 : index
    %144 = vector.load %arg8[%c0_58, %c0_59] : memref<32x128xf32, #tpu.memory_space<vmem>>, vector<32x128xf32>
    %cst_60 = arith.constant dense<0.000000e+00> : vector<8x128xf32>
    %145 = tpu.matmul %143, %144, %cst_60 {dimension_numbers = #tpu.dot_dimension_numbers<[1], [0], [0], [1], [0, 0, 1, 1], [], []>} : vector<8x32xf32>, vector<32x128xf32>, vector<8x128xf32> -> vector<8x128xf32>
    %c0_61 = arith.constant 0 : index
    %c0_62 = arith.constant 0 : index
    %146 = vector.load %arg10[%c0_61, %c0_62] : memref<1x128xf32, #tpu.memory_space<vmem>>, vector<1x128xf32>
    %147 = vector.broadcast %146 : vector<1x128xf32> to vector<8x128xf32>
    %148 = arith.addf %145, %147 : vector<8x128xf32>
    %c0_63 = arith.constant 0 : index
    %c0_64 = arith.constant 0 : index
    %149 = vector.load %arg16[%c0_63, %c0_64] : memref<8x128xf32, #tpu.memory_space<vmem>>, vector<8x128xf32>
    tpu.vector_store %arg16[%c0_63, %c0_64], %148 {strides = array<i32>} : memref<8x128xf32, #tpu.memory_space<vmem>>, vector<8x128xf32>,
    %c1_65 = arith.constant 1 : index
    %c0_66 = arith.constant 0 : index
    %150 = vector.load %arg1[%c1_65, %c0_66] : memref<2x32xf32, #tpu.memory_space<vmem>>, vector<1x32xf32>
    %c1_67 = arith.constant 1 : index
    %c0_68 = arith.constant 0 : index
    %151 = vector.load %arg2[%c1_67, %c0_68] : memref<2x32xf32, #tpu.memory_space<vmem>>, vector<1x32xf32>
    %c0_69 = arith.constant 0 : index
    %c0_70 = arith.constant 0 : index
    %152 = vector.load %arg16[%c0_69, %c0_70] : memref<8x128xf32, #tpu.memory_space<vmem>>, vector<1x128xf32>
    %cst_71 = arith.constant dense<0.000000e+00> : vector<1x128xf32>
    %153 = tpu.matmul %150, %142, %cst_71 {dimension_numbers = #tpu.dot_dimension_numbers<[1], [0], [0], [1], [0, 0, 1, 1], [], []>} : vector<1x32xf32>, vector<32x128xf32>, vector<1x128xf32> -> vector<1x128xf32>
    %154 = arith.addf %152, %153 : vector<1x128xf32>
    %155 = math.tanh %154 : vector<1x128xf32>
    %156 = arith.mulf %155, %0 : vector<1x128xf32>
    %157 = arith.addf %156, %1 : vector<1x128xf32>
    %158 = vector.extract_strided_slice %157 {offsets = [0, 0], sizes = [1, 32], strides = [1, 1]} : vector<1x128xf32> to vector<1x32xf32>
    %159 = vector.extract_strided_slice %157 {offsets = [0, 32], sizes = [1, 32], strides = [1, 1]} : vector<1x128xf32> to vector<1x32xf32>
    %160 = vector.extract_strided_slice %157 {offsets = [0, 64], sizes = [1, 32], strides = [1, 1]} : vector<1x128xf32> to vector<1x32xf32>
    %161 = vector.extract_strided_slice %157 {offsets = [0, 96], sizes = [1, 32], strides = [1, 1]} : vector<1x128xf32> to vector<1x32xf32>
    %162 = arith.mulf %159, %151 : vector<1x32xf32>
    %163 = arith.mulf %158, %160 : vector<1x32xf32>
    %164 = arith.addf %162, %163 : vector<1x32xf32>
    %165 = math.tanh %164 : vector<1x32xf32>
    %166 = arith.mulf %161, %165 : vector<1x32xf32>
    %c0_72 = arith.constant 0 : index
    %c0_73 = arith.constant 0 : index
    %167 = vector.load %arg17[%c0_72, %c0_73] : memref<8x32xf32, #tpu.memory_space<vmem>>, vector<1x32xf32>
    tpu.vector_store %arg17[%c0_72, %c0_73], %166 {strides = array<i32>} : memref<8x32xf32, #tpu.memory_space<vmem>>, vector<1x32xf32>,
    %c1_74 = arith.constant 1 : index
    %c0_75 = arith.constant 0 : index
    %168 = vector.load %arg16[%c1_74, %c0_75] : memref<8x128xf32, #tpu.memory_space<vmem>>, vector<1x128xf32>
    %cst_76 = arith.constant dense<0.000000e+00> : vector<1x128xf32>
    %169 = tpu.matmul %166, %142, %cst_76 {dimension_numbers = #tpu.dot_dimension_numbers<[1], [0], [0], [1], [0, 0, 1, 1], [], []>} : vector<1x32xf32>, vector<32x128xf32>, vector<1x128xf32> -> vector<1x128xf32>
    %170 = arith.addf %168, %169 : vector<1x128xf32>
    %171 = math.tanh %170 : vector<1x128xf32>
    %172 = arith.mulf %171, %0 : vector<1x128xf32>
    %173 = arith.addf %172, %1 : vector<1x128xf32>
    %174 = vector.extract_strided_slice %173 {offsets = [0, 0], sizes = [1, 32], strides = [1, 1]} : vector<1x128xf32> to vector<1x32xf32>
    %175 = vector.extract_strided_slice %173 {offsets = [0, 32], sizes = [1, 32], strides = [1, 1]} : vector<1x128xf32> to vector<1x32xf32>
    %176 = vector.extract_strided_slice %173 {offsets = [0, 64], sizes = [1, 32], strides = [1, 1]} : vector<1x128xf32> to vector<1x32xf32>
    %177 = vector.extract_strided_slice %173 {offsets = [0, 96], sizes = [1, 32], strides = [1, 1]} : vector<1x128xf32> to vector<1x32xf32>
    %178 = arith.mulf %175, %164 : vector<1x32xf32>
    %179 = arith.mulf %174, %176 : vector<1x32xf32>
    %180 = arith.addf %178, %179 : vector<1x32xf32>
    %181 = math.tanh %180 : vector<1x32xf32>
    %182 = arith.mulf %177, %181 : vector<1x32xf32>
    %c1_77 = arith.constant 1 : index
    %c0_78 = arith.constant 0 : index
    %183 = vector.load %arg17[%c1_77, %c0_78] : memref<8x32xf32, #tpu.memory_space<vmem>>, vector<1x32xf32>
    tpu.vector_store %arg17[%c1_77, %c0_78], %182 {strides = array<i32>} : memref<8x32xf32, #tpu.memory_space<vmem>>, vector<1x32xf32>,
    %c2_79 = arith.constant 2 : index
    %c0_80 = arith.constant 0 : index
    %184 = vector.load %arg16[%c2_79, %c0_80] : memref<8x128xf32, #tpu.memory_space<vmem>>, vector<1x128xf32>
    %cst_81 = arith.constant dense<0.000000e+00> : vector<1x128xf32>
    %185 = tpu.matmul %182, %142, %cst_81 {dimension_numbers = #tpu.dot_dimension_numbers<[1], [0], [0], [1], [0, 0, 1, 1], [], []>} : vector<1x32xf32>, vector<32x128xf32>, vector<1x128xf32> -> vector<1x128xf32>
    %186 = arith.addf %184, %185 : vector<1x128xf32>
    %187 = math.tanh %186 : vector<1x128xf32>
    %188 = arith.mulf %187, %0 : vector<1x128xf32>
    %189 = arith.addf %188, %1 : vector<1x128xf32>
    %190 = vector.extract_strided_slice %189 {offsets = [0, 0], sizes = [1, 32], strides = [1, 1]} : vector<1x128xf32> to vector<1x32xf32>
    %191 = vector.extract_strided_slice %189 {offsets = [0, 32], sizes = [1, 32], strides = [1, 1]} : vector<1x128xf32> to vector<1x32xf32>
    %192 = vector.extract_strided_slice %189 {offsets = [0, 64], sizes = [1, 32], strides = [1, 1]} : vector<1x128xf32> to vector<1x32xf32>
    %193 = vector.extract_strided_slice %189 {offsets = [0, 96], sizes = [1, 32], strides = [1, 1]} : vector<1x128xf32> to vector<1x32xf32>
    %194 = arith.mulf %191, %180 : vector<1x32xf32>
    %195 = arith.mulf %190, %192 : vector<1x32xf32>
    %196 = arith.addf %194, %195 : vector<1x32xf32>
    %197 = math.tanh %196 : vector<1x32xf32>
    %198 = arith.mulf %193, %197 : vector<1x32xf32>
    %c2_82 = arith.constant 2 : index
    %c0_83 = arith.constant 0 : index
    %199 = vector.load %arg17[%c2_82, %c0_83] : memref<8x32xf32, #tpu.memory_space<vmem>>, vector<1x32xf32>
    tpu.vector_store %arg17[%c2_82, %c0_83], %198 {strides = array<i32>} : memref<8x32xf32, #tpu.memory_space<vmem>>, vector<1x32xf32>,
    %c3_84 = arith.constant 3 : index
    %c0_85 = arith.constant 0 : index
    %200 = vector.load %arg16[%c3_84, %c0_85] : memref<8x128xf32, #tpu.memory_space<vmem>>, vector<1x128xf32>
    %cst_86 = arith.constant dense<0.000000e+00> : vector<1x128xf32>
    %201 = tpu.matmul %198, %142, %cst_86 {dimension_numbers = #tpu.dot_dimension_numbers<[1], [0], [0], [1], [0, 0, 1, 1], [], []>} : vector<1x32xf32>, vector<32x128xf32>, vector<1x128xf32> -> vector<1x128xf32>
    %202 = arith.addf %200, %201 : vector<1x128xf32>
    %203 = math.tanh %202 : vector<1x128xf32>
    %204 = arith.mulf %203, %0 : vector<1x128xf32>
    %205 = arith.addf %204, %1 : vector<1x128xf32>
    %206 = vector.extract_strided_slice %205 {offsets = [0, 0], sizes = [1, 32], strides = [1, 1]} : vector<1x128xf32> to vector<1x32xf32>
    %207 = vector.extract_strided_slice %205 {offsets = [0, 32], sizes = [1, 32], strides = [1, 1]} : vector<1x128xf32> to vector<1x32xf32>
    %208 = vector.extract_strided_slice %205 {offsets = [0, 64], sizes = [1, 32], strides = [1, 1]} : vector<1x128xf32> to vector<1x32xf32>
    %209 = vector.extract_strided_slice %205 {offsets = [0, 96], sizes = [1, 32], strides = [1, 1]} : vector<1x128xf32> to vector<1x32xf32>
    %210 = arith.mulf %207, %196 : vector<1x32xf32>
    %211 = arith.mulf %206, %208 : vector<1x32xf32>
    %212 = arith.addf %210, %211 : vector<1x32xf32>
    %213 = math.tanh %212 : vector<1x32xf32>
    %214 = arith.mulf %209, %213 : vector<1x32xf32>
    %c3_87 = arith.constant 3 : index
    %c0_88 = arith.constant 0 : index
    %215 = vector.load %arg17[%c3_87, %c0_88] : memref<8x32xf32, #tpu.memory_space<vmem>>, vector<1x32xf32>
    tpu.vector_store %arg17[%c3_87, %c0_88], %214 {strides = array<i32>} : memref<8x32xf32, #tpu.memory_space<vmem>>, vector<1x32xf32>,
    %c4_89 = arith.constant 4 : index
    %c0_90 = arith.constant 0 : index
    %216 = vector.load %arg16[%c4_89, %c0_90] : memref<8x128xf32, #tpu.memory_space<vmem>>, vector<1x128xf32>
    %cst_91 = arith.constant dense<0.000000e+00> : vector<1x128xf32>
    %217 = tpu.matmul %214, %142, %cst_91 {dimension_numbers = #tpu.dot_dimension_numbers<[1], [0], [0], [1], [0, 0, 1, 1], [], []>} : vector<1x32xf32>, vector<32x128xf32>, vector<1x128xf32> -> vector<1x128xf32>
    %218 = arith.addf %216, %217 : vector<1x128xf32>
    %219 = math.tanh %218 : vector<1x128xf32>
    %220 = arith.mulf %219, %0 : vector<1x128xf32>
    %221 = arith.addf %220, %1 : vector<1x128xf32>
    %222 = vector.extract_strided_slice %221 {offsets = [0, 0], sizes = [1, 32], strides = [1, 1]} : vector<1x128xf32> to vector<1x32xf32>
    %223 = vector.extract_strided_slice %221 {offsets = [0, 32], sizes = [1, 32], strides = [1, 1]} : vector<1x128xf32> to vector<1x32xf32>
    %224 = vector.extract_strided_slice %221 {offsets = [0, 64], sizes = [1, 32], strides = [1, 1]} : vector<1x128xf32> to vector<1x32xf32>
    %225 = vector.extract_strided_slice %221 {offsets = [0, 96], sizes = [1, 32], strides = [1, 1]} : vector<1x128xf32> to vector<1x32xf32>
    %226 = arith.mulf %223, %212 : vector<1x32xf32>
    %227 = arith.mulf %222, %224 : vector<1x32xf32>
    %228 = arith.addf %226, %227 : vector<1x32xf32>
    %229 = math.tanh %228 : vector<1x32xf32>
    %230 = arith.mulf %225, %229 : vector<1x32xf32>
    %c4_92 = arith.constant 4 : index
    %c0_93 = arith.constant 0 : index
    %231 = vector.load %arg17[%c4_92, %c0_93] : memref<8x32xf32, #tpu.memory_space<vmem>>, vector<1x32xf32>
    tpu.vector_store %arg17[%c4_92, %c0_93], %230 {strides = array<i32>} : memref<8x32xf32, #tpu.memory_space<vmem>>, vector<1x32xf32>,
    %c5_94 = arith.constant 5 : index
    %c0_95 = arith.constant 0 : index
    %232 = vector.load %arg16[%c5_94, %c0_95] : memref<8x128xf32, #tpu.memory_space<vmem>>, vector<1x128xf32>
    %cst_96 = arith.constant dense<0.000000e+00> : vector<1x128xf32>
    %233 = tpu.matmul %230, %142, %cst_96 {dimension_numbers = #tpu.dot_dimension_numbers<[1], [0], [0], [1], [0, 0, 1, 1], [], []>} : vector<1x32xf32>, vector<32x128xf32>, vector<1x128xf32> -> vector<1x128xf32>
    %234 = arith.addf %232, %233 : vector<1x128xf32>
    %235 = math.tanh %234 : vector<1x128xf32>
    %236 = arith.mulf %235, %0 : vector<1x128xf32>
    %237 = arith.addf %236, %1 : vector<1x128xf32>
    %238 = vector.extract_strided_slice %237 {offsets = [0, 0], sizes = [1, 32], strides = [1, 1]} : vector<1x128xf32> to vector<1x32xf32>
    %239 = vector.extract_strided_slice %237 {offsets = [0, 32], sizes = [1, 32], strides = [1, 1]} : vector<1x128xf32> to vector<1x32xf32>
    %240 = vector.extract_strided_slice %237 {offsets = [0, 64], sizes = [1, 32], strides = [1, 1]} : vector<1x128xf32> to vector<1x32xf32>
    %241 = vector.extract_strided_slice %237 {offsets = [0, 96], sizes = [1, 32], strides = [1, 1]} : vector<1x128xf32> to vector<1x32xf32>
    %242 = arith.mulf %239, %228 : vector<1x32xf32>
    %243 = arith.mulf %238, %240 : vector<1x32xf32>
    %244 = arith.addf %242, %243 : vector<1x32xf32>
    %245 = math.tanh %244 : vector<1x32xf32>
    %246 = arith.mulf %241, %245 : vector<1x32xf32>
    %c5_97 = arith.constant 5 : index
    %c0_98 = arith.constant 0 : index
    %247 = vector.load %arg17[%c5_97, %c0_98] : memref<8x32xf32, #tpu.memory_space<vmem>>, vector<1x32xf32>
    tpu.vector_store %arg17[%c5_97, %c0_98], %246 {strides = array<i32>} : memref<8x32xf32, #tpu.memory_space<vmem>>, vector<1x32xf32>,
    %c6_99 = arith.constant 6 : index
    %c0_100 = arith.constant 0 : index
    %248 = vector.load %arg16[%c6_99, %c0_100] : memref<8x128xf32, #tpu.memory_space<vmem>>, vector<1x128xf32>
    %cst_101 = arith.constant dense<0.000000e+00> : vector<1x128xf32>
    %249 = tpu.matmul %246, %142, %cst_101 {dimension_numbers = #tpu.dot_dimension_numbers<[1], [0], [0], [1], [0, 0, 1, 1], [], []>} : vector<1x32xf32>, vector<32x128xf32>, vector<1x128xf32> -> vector<1x128xf32>
    %250 = arith.addf %248, %249 : vector<1x128xf32>
    %251 = math.tanh %250 : vector<1x128xf32>
    %252 = arith.mulf %251, %0 : vector<1x128xf32>
    %253 = arith.addf %252, %1 : vector<1x128xf32>
    %254 = vector.extract_strided_slice %253 {offsets = [0, 0], sizes = [1, 32], strides = [1, 1]} : vector<1x128xf32> to vector<1x32xf32>
    %255 = vector.extract_strided_slice %253 {offsets = [0, 32], sizes = [1, 32], strides = [1, 1]} : vector<1x128xf32> to vector<1x32xf32>
    %256 = vector.extract_strided_slice %253 {offsets = [0, 64], sizes = [1, 32], strides = [1, 1]} : vector<1x128xf32> to vector<1x32xf32>
    %257 = vector.extract_strided_slice %253 {offsets = [0, 96], sizes = [1, 32], strides = [1, 1]} : vector<1x128xf32> to vector<1x32xf32>
    %258 = arith.mulf %255, %244 : vector<1x32xf32>
    %259 = arith.mulf %254, %256 : vector<1x32xf32>
    %260 = arith.addf %258, %259 : vector<1x32xf32>
    %261 = math.tanh %260 : vector<1x32xf32>
    %262 = arith.mulf %257, %261 : vector<1x32xf32>
    %c6_102 = arith.constant 6 : index
    %c0_103 = arith.constant 0 : index
    %263 = vector.load %arg17[%c6_102, %c0_103] : memref<8x32xf32, #tpu.memory_space<vmem>>, vector<1x32xf32>
    tpu.vector_store %arg17[%c6_102, %c0_103], %262 {strides = array<i32>} : memref<8x32xf32, #tpu.memory_space<vmem>>, vector<1x32xf32>,
    %c7_104 = arith.constant 7 : index
    %c0_105 = arith.constant 0 : index
    %264 = vector.load %arg16[%c7_104, %c0_105] : memref<8x128xf32, #tpu.memory_space<vmem>>, vector<1x128xf32>
    %cst_106 = arith.constant dense<0.000000e+00> : vector<1x128xf32>
    %265 = tpu.matmul %262, %142, %cst_106 {dimension_numbers = #tpu.dot_dimension_numbers<[1], [0], [0], [1], [0, 0, 1, 1], [], []>} : vector<1x32xf32>, vector<32x128xf32>, vector<1x128xf32> -> vector<1x128xf32>
    %266 = arith.addf %264, %265 : vector<1x128xf32>
    %267 = math.tanh %266 : vector<1x128xf32>
    %268 = arith.mulf %267, %0 : vector<1x128xf32>
    %269 = arith.addf %268, %1 : vector<1x128xf32>
    %270 = vector.extract_strided_slice %269 {offsets = [0, 0], sizes = [1, 32], strides = [1, 1]} : vector<1x128xf32> to vector<1x32xf32>
    %271 = vector.extract_strided_slice %269 {offsets = [0, 32], sizes = [1, 32], strides = [1, 1]} : vector<1x128xf32> to vector<1x32xf32>
    %272 = vector.extract_strided_slice %269 {offsets = [0, 64], sizes = [1, 32], strides = [1, 1]} : vector<1x128xf32> to vector<1x32xf32>
    %273 = vector.extract_strided_slice %269 {offsets = [0, 96], sizes = [1, 32], strides = [1, 1]} : vector<1x128xf32> to vector<1x32xf32>
    %274 = arith.mulf %271, %260 : vector<1x32xf32>
    %275 = arith.mulf %270, %272 : vector<1x32xf32>
    %276 = arith.addf %274, %275 : vector<1x32xf32>
    %277 = math.tanh %276 : vector<1x32xf32>
    %278 = arith.mulf %273, %277 : vector<1x32xf32>
    %c7_107 = arith.constant 7 : index
    %c0_108 = arith.constant 0 : index
    %279 = vector.load %arg17[%c7_107, %c0_108] : memref<8x32xf32, #tpu.memory_space<vmem>>, vector<1x32xf32>
    tpu.vector_store %arg17[%c7_107, %c0_108], %278 {strides = array<i32>} : memref<8x32xf32, #tpu.memory_space<vmem>>, vector<1x32xf32>,
    %c1_109 = arith.constant 1 : index
    %c0_110 = arith.constant 0 : index
    %280 = vector.load %arg14[%c1_109, %c0_110] : memref<2x32xf32, #tpu.memory_space<vmem>>, vector<1x32xf32>
    tpu.vector_store %arg14[%c1_109, %c0_110], %278 {strides = array<i32>} : memref<2x32xf32, #tpu.memory_space<vmem>>, vector<1x32xf32>,
    %c1_111 = arith.constant 1 : index
    %c0_112 = arith.constant 0 : index
    %281 = vector.load %arg15[%c1_111, %c0_112] : memref<2x32xf32, #tpu.memory_space<vmem>>, vector<1x32xf32>
    tpu.vector_store %arg15[%c1_111, %c0_112], %276 {strides = array<i32>} : memref<2x32xf32, #tpu.memory_space<vmem>>, vector<1x32xf32>,
    %c0_113 = arith.constant 0 : index
    %c0_114 = arith.constant 0 : index
    %282 = vector.load %arg17[%c0_113, %c0_114] : memref<8x32xf32, #tpu.memory_space<vmem>>, vector<8x32xf32>
    %c0_115 = arith.constant 0 : index
    %c0_116 = arith.constant 0 : index
    %283 = vector.load %arg11[%c0_115, %c0_116] : memref<32x128xf32, #tpu.memory_space<vmem>>, vector<32x128xf32>
    %cst_117 = arith.constant dense<0.000000e+00> : vector<8x128xf32>
    %284 = tpu.matmul %282, %283, %cst_117 {dimension_numbers = #tpu.dot_dimension_numbers<[1], [0], [0], [1], [0, 0, 1, 1], [], []>} : vector<8x32xf32>, vector<32x128xf32>, vector<8x128xf32> -> vector<8x128xf32>
    %c0_118 = arith.constant 0 : index
    %c0_119 = arith.constant 0 : index
    %285 = vector.load %arg12[%c0_118, %c0_119] : memref<1x128xf32, #tpu.memory_space<vmem>>, vector<1x128xf32>
    %286 = vector.broadcast %285 : vector<1x128xf32> to vector<8x128xf32>
    %287 = arith.addf %284, %286 : vector<8x128xf32>
    %c0_120 = arith.constant 0 : index
    %c0_121 = arith.constant 0 : index
    %288 = vector.load %arg13[%c0_120, %c0_121] : memref<8x128xf32, #tpu.memory_space<vmem>>, vector<8x128xf32>
    tpu.vector_store %arg13[%c0_120, %c0_121], %287 {strides = array<i32>} : memref<8x128xf32, #tpu.memory_space<vmem>>, vector<8x128xf32>,
    return
  }
}

</mosaic_0001>

<llo_original>
// kernel: tpu_custom_call.1
$region0: #{tpu_custom_call.1}
  #allocation0 [shape = 'u32[]', space=smem, size = 0x4, offset = 0x4, fixed_abs, tag = 'smem constant byte address 0x4 - core index']
  #allocation1 [shape = 'u32[144,128]{1,0:T(1,128)}', space=vmem, size = 0x12000, scoped, tag = 'internal scratch']
  #allocation2 [shape = 'f32[8,128]{1,0:T(8,128)}', space=vmem, size = 0x1000, scoped, tag = 'scratch operand']
  #allocation3 [shape = 'f32[8,32]{1,0:T(8,128)}', space=vmem, size = 0x1000, scoped, tag = 'scratch operand']
  %s0 = inlined_call_operand.hbm [shape: f32[8,8], index: 0, kind: input, shape index: {}]
  %s1 = inlined_call_operand.vmem [shape: f32[2,32], index: 1, kind: input, shape index: {}]
  %s2 = inlined_call_operand.hbm [shape: f32[2,32], index: 2, kind: input, shape index: {}]
  %s3 = inlined_call_operand.hbm [shape: f32[1,128], index: 3, kind: input, shape index: {}]
  %s4 = inlined_call_operand.hbm [shape: f32[1,128], index: 4, kind: input, shape index: {}]
  %s5 = inlined_call_operand.hbm [shape: f32[8,128], index: 5, kind: input, shape index: {}]
  %s6 = inlined_call_operand.hbm [shape: f32[32,128], index: 6, kind: input, shape index: {}]
  %s7 = inlined_call_operand.hbm [shape: f32[1,128], index: 7, kind: input, shape index: {}]
  %s8 = inlined_call_operand.hbm [shape: f32[32,128], index: 8, kind: input, shape index: {}]
  %s9 = inlined_call_operand.vmem [shape: f32[32,128], index: 9, kind: input, shape index: {}]
  %s10 = inlined_call_operand.vmem [shape: f32[1,128], index: 10, kind: input, shape index: {}]
  %s11 = inlined_call_operand.hbm [shape: f32[32,128], index: 11, kind: input, shape index: {}]
  %s12 = inlined_call_operand.vmem [shape: f32[1,128], index: 12, kind: input, shape index: {}]
  %s13 = inlined_call_operand.hbm [shape: f32[8,128], index: 13, kind: output, shape index: {0}]
  %s14 = inlined_call_operand.hbm [shape: f32[2,32], index: 14, kind: output, shape index: {1}]
  %s15 = inlined_call_operand.hbm [shape: f32[2,32], index: 15, kind: output, shape index: {2}]
  %16 = xla_tuple %s13, %s14, %s15
  %s17 = sld [smem:[#allocation0]]
  $region114: #{tpu_custom_call.1} parent=0
    _
  %s19 = ssub.s32 1, %s17
  %s20 = scalar_select 0, %s19, %s17
  $region1: #{tpu_custom_call.1} parent=0
    #allocation4 [shape = 'u8[4096]{0}', space=vmem, size = 0x1000, scoped, tag = 'input window, operand 0, single buffered']
    #allocation5 [shape = 's32[1]{0}', space=sflag, size = 0x4, scoped, tag = 'scoped memory for tpu_custom_call.1']
    #allocation6 [shape = 's32[1]{0}', space=sflag, size = 0x4, scoped, tag = 'scoped memory for tpu_custom_call.1']
    #allocation7 [shape = 'u8[1024]{0}', space=vmem, size = 0x400, scoped, tag = 'input window, operand 2, single buffered']
    #allocation8 [shape = 's32[1]{0}', space=sflag, size = 0x4, scoped, tag = 'scoped memory for tpu_custom_call.1']
    #allocation9 [shape = 'u8[512]{0}', space=vmem, size = 0x400, scoped, tag = 'input window, operand 3, single buffered']
    #allocation10 [shape = 'u8[512]{0}', space=vmem, size = 0x400, scoped, tag = 'input window, operand 4, single buffered']
    #allocation11 [shape = 's32[1]{0}', space=sflag, size = 0x4, scoped, tag = 'scoped memory for tpu_custom_call.1']
    #allocation12 [shape = 'u8[4096]{0}', space=vmem, size = 0x1000, scoped, tag = 'input window, operand 5, single buffered']
    #allocation13 [shape = 'u8[16384]{0}', space=vmem, size = 0x4000, scoped, tag = 'input window, operand 6, single buffered']
    #allocation14 [shape = 's32[1]{0}', space=sflag, size = 0x4, scoped, tag = 'scoped memory for tpu_custom_call.1']
    #allocation15 [shape = 'u8[512]{0}', space=vmem, size = 0x400, scoped, tag = 'input window, operand 7, single buffered']
    #allocation16 [shape = 'u8[16384]{0}', space=vmem, size = 0x4000, scoped, tag = 'input window, operand 8, single buffered']
    #allocation17 [shape = 's32[1]{0}', space=sflag, size = 0x4, scoped, tag = 'scoped memory for tpu_custom_call.1']
    #allocation18 [shape = 'u8[16384]{0}', space=vmem, size = 0x4000, scoped, tag = 'input window, operand 11, single buffered']
    #allocation19 [shape = 'u8[4096]{0}', space=vmem, size = 0x1000, scoped, tag = 'output window, operand 0, single buffered']
    #allocation20 [shape = 'u8[1024]{0}', space=vmem, size = 0x400, scoped, tag = 'output window, operand 1, single buffered']
    #allocation21 [shape = 's32[1]{0}', space=sflag, size = 0x4, scoped, tag = 'scoped memory for tpu_custom_call.1']
    #allocation22 [shape = 'u8[1024]{0}', space=vmem, size = 0x400, scoped, tag = 'output window, operand 2, single buffered']
    %21 = vsyncpa [#allocation5], 0
    %22 = vsyncpa [#allocation8], 0
    %23 = vsyncpa [#allocation11], 0
    %24 = vsyncpa [#allocation14], 0
    %25 = vsyncpa [#allocation17], 0
    %26 = vsyncpa [#allocation6], 0
    %27 = vsyncpa [#allocation21], 0
    // Predicated region
    $region2: #{tpu_custom_call.1} parent=1 // pred_check
      _
    $region3: #{tpu_custom_call.1} parent=1 // pred_check_branch
      %29 = sbr.rel (0) target = $region5
    $region4: #{tpu_custom_call.1} parent=1 // pred_region
      %s31 = ssub.s32 128, 128
      %32 = vsyncadd [#allocation5], %s31
      %s34 = sshll.u32 [#allocation4], 4
      %s35 = int_to_ptr.vmem [resolvable:$true] %s34
      %37 = dma.hbm_to_vmem [thread:$0]  %s0, 128, %s35, [#allocation5]
    $region5: #{tpu_custom_call.1} parent=1 // pred_fallthru
      _
    // Predicated region
    $region6: #{tpu_custom_call.1} parent=1 // pred_check
      _
    $region7: #{tpu_custom_call.1} parent=1 // pred_check_branch
      %39 = sbr.rel (0) target = $region9
    $region8: #{tpu_custom_call.1} parent=1 // pred_region
      _
    $region9: #{tpu_custom_call.1} parent=1 // pred_fallthru
      _
    // Predicated region
    $region10: #{tpu_custom_call.1} parent=1 // pred_check
      _
    $region11: #{tpu_custom_call.1} parent=1 // pred_check_branch
      %41 = sbr.rel (0) target = $region13
    $region12: #{tpu_custom_call.1} parent=1 // pred_region
      %s43 = ssub.s32 32, 32
      %44 = vsyncadd [#allocation8], %s43
      %s46 = sshll.u32 [#allocation7], 4
      %s47 = int_to_ptr.vmem [resolvable:$true] %s46
      %49 = dma.hbm_to_vmem [thread:$0]  %s2, 32, %s47, [#allocation8]
    $region13: #{tpu_custom_call.1} parent=1 // pred_fallthru
      _
    // Predicated region
    $region14: #{tpu_custom_call.1} parent=1 // pred_check
      _
    $region15: #{tpu_custom_call.1} parent=1 // pred_check_branch
      %51 = sbr.rel (0) target = $region17
    $region16: #{tpu_custom_call.1} parent=1 // pred_region
      %s53 = ssub.s32 16, 16
      %54 = vsyncadd [#allocation8], %s53
      %s56 = sshll.u32 [#allocation9], 4
      %s57 = int_to_ptr.vmem [resolvable:$true] %s56
      %59 = dma.hbm_to_vmem [thread:$0]  %s3, 16, %s57, [#allocation8]
    $region17: #{tpu_custom_call.1} parent=1 // pred_fallthru
      _
    // Predicated region
    $region18: #{tpu_custom_call.1} parent=1 // pred_check
      _
    $region19: #{tpu_custom_call.1} parent=1 // pred_check_branch
      %61 = sbr.rel (0) target = $region21
    $region20: #{tpu_custom_call.1} parent=1 // pred_region
      %s63 = ssub.s32 16, 16
      %64 = vsyncadd [#allocation11], %s63
      %s66 = sshll.u32 [#allocation10], 4
      %s67 = int_to_ptr.vmem [resolvable:$true] %s66
      %69 = dma.hbm_to_vmem [thread:$0]  %s4, 16, %s67, [#allocation11]
    $region21: #{tpu_custom_call.1} parent=1 // pred_fallthru
      _
    // Predicated region
    $region22: #{tpu_custom_call.1} parent=1 // pred_check
      _
    $region23: #{tpu_custom_call.1} parent=1 // pred_check_branch
      %71 = sbr.rel (0) target = $region25
    $region24: #{tpu_custom_call.1} parent=1 // pred_region
      %s73 = ssub.s32 128, 128
      %74 = vsyncadd [#allocation11], %s73
      %s76 = sshll.u32 [#allocation12], 4
      %s77 = int_to_ptr.vmem [resolvable:$true] %s76
      %79 = dma.hbm_to_vmem [thread:$0]  %s5, 128, %s77, [#allocation11]
    $region25: #{tpu_custom_call.1} parent=1 // pred_fallthru
      _
    // Predicated region
    $region26: #{tpu_custom_call.1} parent=1 // pred_check
      _
    $region27: #{tpu_custom_call.1} parent=1 // pred_check_branch
      %81 = sbr.rel (0) target = $region29
    $region28: #{tpu_custom_call.1} parent=1 // pred_region
      %s83 = ssub.s32 512, 512
      %84 = vsyncadd [#allocation14], %s83
      %s85 = sshll.u32 [#allocation13], 4
      %s86 = int_to_ptr.vmem [resolvable:$true] %s85
      %91 = dma.hbm_to_vmem [thread:$0]  %s6, 512, %s86, [#allocation14], 128, 128, 8
    $region29: #{tpu_custom_call.1} parent=1 // pred_fallthru
      _
    // Predicated region
    $region30: #{tpu_custom_call.1} parent=1 // pred_check
      _
    $region31: #{tpu_custom_call.1} parent=1 // pred_check_branch
      %93 = sbr.rel (0) target = $region33
    $region32: #{tpu_custom_call.1} parent=1 // pred_region
      %s95 = ssub.s32 16, 16
      %96 = vsyncadd [#allocation14], %s95
      %s98 = sshll.u32 [#allocation15], 4
      %s99 = int_to_ptr.vmem [resolvable:$true] %s98
      %101 = dma.hbm_to_vmem [thread:$0]  %s7, 16, %s99, [#allocation14]
    $region33: #{tpu_custom_call.1} parent=1 // pred_fallthru
      _
    // Predicated region
    $region34: #{tpu_custom_call.1} parent=1 // pred_check
      _
    $region35: #{tpu_custom_call.1} parent=1 // pred_check_branch
      %103 = sbr.rel (0) target = $region37
    $region36: #{tpu_custom_call.1} parent=1 // pred_region
      %s105 = ssub.s32 512, 512
      %106 = vsyncadd [#allocation17], %s105
      %s107 = sshll.u32 [#allocation16], 4
      %s108 = int_to_ptr.vmem [resolvable:$true] %s107
      %113 = dma.hbm_to_vmem [thread:$0]  %s8, 512, %s108, [#allocation17], 128, 128, 8
    $region37: #{tpu_custom_call.1} parent=1 // pred_fallthru
      _
    // Predicated region
    $region38: #{tpu_custom_call.1} parent=1 // pred_check
      _
    $region39: #{tpu_custom_call.1} parent=1 // pred_check_branch
      %115 = sbr.rel (0) target = $region41
    $region40: #{tpu_custom_call.1} parent=1 // pred_region
      _
    $region41: #{tpu_custom_call.1} parent=1 // pred_fallthru
      _
    // Predicated region
    $region42: #{tpu_custom_call.1} parent=1 // pred_check
      _
    $region43: #{tpu_custom_call.1} parent=1 // pred_check_branch
      %117 = sbr.rel (0) target = $region45
    $region44: #{tpu_custom_call.1} parent=1 // pred_region
      _
    $region45: #{tpu_custom_call.1} parent=1 // pred_fallthru
      _
    // Predicated region
    $region46: #{tpu_custom_call.1} parent=1 // pred_check
      _
    $region47: #{tpu_custom_call.1} parent=1 // pred_check_branch
      %119 = sbr.rel (0) target = $region49
    $region48: #{tpu_custom_call.1} parent=1 // pred_region
      %s121 = ssub.s32 512, 512
      %122 = vsyncadd [#allocation17], %s121
      %s123 = sshll.u32 [#allocation18], 4
      %s124 = int_to_ptr.vmem [resolvable:$true] %s123
      %129 = dma.hbm_to_vmem [thread:$0]  %s11, 512, %s124, [#allocation17], 128, 128, 8
    $region49: #{tpu_custom_call.1} parent=1 // pred_fallthru
      _
    // Predicated region
    $region50: #{tpu_custom_call.1} parent=1 // pred_check
      _
    $region51: #{tpu_custom_call.1} parent=1 // pred_check_branch
      %131 = sbr.rel (0) target = $region53
    $region52: #{tpu_custom_call.1} parent=1 // pred_region
      _
    $region53: #{tpu_custom_call.1} parent=1 // pred_fallthru
      _
    // Predicated region
    $region54: #{tpu_custom_call.1} parent=1 // pred_check
      _
    $region55: #{tpu_custom_call.1} parent=1 // pred_check_branch
      %133 = sbr.rel (0) target = $region57
    $region56: #{tpu_custom_call.1} parent=1 // pred_region
      %134 = dma.done [#allocation5], 128
    $region57: #{tpu_custom_call.1} parent=1 // pred_fallthru
      _
    // Predicated region
    $region58: #{tpu_custom_call.1} parent=1 // pred_check
      _
    $region59: #{tpu_custom_call.1} parent=1 // pred_check_branch
      %136 = sbr.rel (0) target = $region61
    $region60: #{tpu_custom_call.1} parent=1 // pred_region
      %137 = dma.done [#allocation8], 32
    $region61: #{tpu_custom_call.1} parent=1 // pred_fallthru
      _
    // Predicated region
    $region62: #{tpu_custom_call.1} parent=1 // pred_check
      _
    $region63: #{tpu_custom_call.1} parent=1 // pred_check_branch
      %139 = sbr.rel (0) target = $region65
    $region64: #{tpu_custom_call.1} parent=1 // pred_region
      %140 = dma.done [#allocation8], 16
    $region65: #{tpu_custom_call.1} parent=1 // pred_fallthru
      _
    // Predicated region
    $region66: #{tpu_custom_call.1} parent=1 // pred_check
      _
    $region67: #{tpu_custom_call.1} parent=1 // pred_check_branch
      %142 = sbr.rel (0) target = $region69
    $region68: #{tpu_custom_call.1} parent=1 // pred_region
      %143 = dma.done [#allocation11], 16
    $region69: #{tpu_custom_call.1} parent=1 // pred_fallthru
      _
    // Predicated region
    $region70: #{tpu_custom_call.1} parent=1 // pred_check
      _
    $region71: #{tpu_custom_call.1} parent=1 // pred_check_branch
      %145 = sbr.rel (0) target = $region73
    $region72: #{tpu_custom_call.1} parent=1 // pred_region
      %146 = dma.done [#allocation11], 128
    $region73: #{tpu_custom_call.1} parent=1 // pred_fallthru
      _
    // Predicated region
    $region74: #{tpu_custom_call.1} parent=1 // pred_check
      _
    $region75: #{tpu_custom_call.1} parent=1 // pred_check_branch
      %148 = sbr.rel (0) target = $region77
    $region76: #{tpu_custom_call.1} parent=1 // pred_region
      %149 = dma.done [#allocation14], 512
    $region77: #{tpu_custom_call.1} parent=1 // pred_fallthru
      _
    // Predicated region
    $region78: #{tpu_custom_call.1} parent=1 // pred_check
      _
    $region79: #{tpu_custom_call.1} parent=1 // pred_check_branch
      %151 = sbr.rel (0) target = $region81
    $region80: #{tpu_custom_call.1} parent=1 // pred_region
      %152 = dma.done [#allocation14], 16
    $region81: #{tpu_custom_call.1} parent=1 // pred_fallthru
      _
    // Predicated region
    $region82: #{tpu_custom_call.1} parent=1 // pred_check
      _
    $region83: #{tpu_custom_call.1} parent=1 // pred_check_branch
      %154 = sbr.rel (0) target = $region85
    $region84: #{tpu_custom_call.1} parent=1 // pred_region
      %155 = dma.done [#allocation17], 512
    $region85: #{tpu_custom_call.1} parent=1 // pred_fallthru
      _
    // Predicated region
    $region86: #{tpu_custom_call.1} parent=1 // pred_check
      _
    $region87: #{tpu_custom_call.1} parent=1 // pred_check_branch
      %157 = sbr.rel (0) target = $region89
    $region88: #{tpu_custom_call.1} parent=1 // pred_region
      %158 = dma.done [#allocation17], 512
    $region89: #{tpu_custom_call.1} parent=1 // pred_fallthru
      _
    %v159 = vld [vmem:[#allocation9] sm:$0x1]
    %v160 = vld [vmem:[#allocation10] sm:$0x1]
    %v161 = vld [vmem:[#allocation13] sm:$0xff]
    %v162 = vld [vmem:[#allocation13 + $0x8] sm:$0xff]
    %v163 = vld [vmem:[#allocation13 + $0x10] sm:$0xff]
    %v164 = vld [vmem:[#allocation13 + $0x18] sm:$0xff]
    %v165 = vld [vmem:[#allocation4] sm:$0xff]
    %v166 = vld [vmem:[#allocation12] sm:$0xff]
    %v167 = vld [vmem:[#allocation15] sm:$0x1]
    %v169 = vlaneseq
    %v170 = vshrl.u32 %v169, 7
    %v171 = vsub.s32 0, %v170
    %v172 = vrot.slane %v167, %v171
    %vm174 = vcmask 64512
    %v176 = vsel %vm174, %v165, 0
    %178 = vmatprep.subr.mxu0 0.0
    %179 = vmatpush1.msra.mxu0 %v166
    %180 = vmatprep.subr.mxu0 0.0
    %181 = vmatpush1.msra.mxu0 0.0
    %182 = vmatprep.subr.mxu0 0.0
    %183 = vmatpush1.msra.mxu0 0.0
    %184 = vmatprep.subr.mxu0 0.0
    %185 = vmatpush1.msra.mxu0 0.0
    %186 = vmatprep.subr.mxu0 0.0
    %187 = vmatpush1.msra.mxu0 0.0
    %188 = vmatprep.subr.mxu0 0.0
    %189 = vmatpush1.msra.mxu0 0.0
    %190 = vmatprep.subr.mxu0 0.0
    %191 = vmatpush1.msra.mxu0 0.0
    %192 = vmatprep.subr.mxu0 0.0
    %193 = vmatpush1.msra.mxu0 0.0
    %194 = vmatprep.subr.mxu0 0.0
    %195 = vmatpush1.msra.mxu0 0.0
    %196 = vmatprep.subr.mxu0 0.0
    %197 = vmatpush1.msra.mxu0 0.0
    %198 = vmatprep.subr.mxu0 0.0
    %199 = vmatpush1.msra.mxu0 0.0
    %200 = vmatprep.subr.mxu0 0.0
    %201 = vmatpush1.msra.mxu0 0.0
    %202 = vmatprep.subr.mxu0 0.0
    %203 = vmatpush1.msra.mxu0 0.0
    %204 = vmatprep.subr.mxu0 0.0
    %205 = vmatpush1.msra.mxu0 0.0
    %206 = vmatprep.subr.mxu0 0.0
    %207 = vmatpush1.msra.mxu0 0.0
    %208 = vmatprep.subr.mxu0 0.0
    %209 = vmatpush1.msra.mxu0 0.0
    %210 = vmatprep.subr.mxu0 0.0
    %211 = vmatpush1.msra.mxu0 0.0
    %212 = vmatprep.subr.mxu0 0.0
    %213 = vmatpush1.msra.mxu0 0.0
    %214 = vmatprep.subr.mxu0 0.0
    %215 = vmatpush1.msra.mxu0 0.0
    %216 = vmatprep.subr.mxu0 0.0
    %217 = vmatpush1.msra.mxu0 0.0
    %218 = vmatprep.subr.mxu0 0.0
    %219 = vmatpush1.msra.mxu0 0.0
    %220 = vmatprep.subr.mxu0 0.0
    %221 = vmatpush1.msra.mxu0 0.0
    %222 = vmatprep.subr.mxu0 0.0
    %223 = vmatpush1.msra.mxu0 0.0
    %224 = vmatprep.subr.mxu0 0.0
    %225 = vmatpush1.msra.mxu0 0.0
    %226 = vmatprep.subr.mxu0 0.0
    %227 = vmatpush1.msra.mxu0 0.0
    %228 = vmatprep.subr.mxu0 0.0
    %229 = vmatpush1.msra.mxu0 0.0
    %230 = vmatprep.subr.mxu0 0.0
    %231 = vmatpush1.msra.mxu0 0.0
    %232 = vmatprep.subr.mxu0 0.0
    %233 = vmatpush1.msra.mxu0 0.0
    %234 = vmatprep.subr.mxu0 0.0
    %235 = vmatpush1.msra.mxu0 0.0
    %236 = vmatprep.subr.mxu0 0.0
    %237 = vmatpush1.msra.mxu0 0.0
    %238 = vmatprep.subr.mxu0 0.0
    %239 = vmatpush1.msra.mxu0 0.0
    %240 = vmatprep.subr.mxu0 0.0
    %241 = vmatpush1.msra.mxu0 0.0
    %242 = vmatprep.mubr.f32.mxu0 0.0
    %243 = vmatmul.mubr.f32.gmra.mrb[0].mxu0 %v176
    %v244 = vpop.f32.mrb[0].mxu0
    %v245 = vadd.f32 %v172, %v244
    %v246 = vpop.f32.mrb[0].mxu0
    %247 = vdwg.mxu0
    %248 = vst [vmem:[#allocation2] sm:$0xff] %v245
    %v249 = vld [vmem:[%s1] sm:$0x1]
    %v250 = vld [vmem:[#allocation7] sm:$0x1]
    %v251 = vld [vmem:[#allocation2] sm:$0x1]
    %vm252 = vcmask 261120
    %v254 = vsel %vm252, %v249, 0
    %256 = vmatprep.subr.mxu0 0.0
    %257 = vmatpush1.msra.mxu0 %v161
    %258 = vmatprep.subr.mxu0 0.0
    %259 = vmatpush1.msra.mxu0 %v162
    %260 = vmatprep.subr.mxu0 0.0
    %261 = vmatpush1.msra.mxu0 %v163
    %262 = vmatprep.subr.mxu0 0.0
    %263 = vmatpush1.msra.mxu0 %v164
    %264 = vmatprep.subr.mxu0 0.0
    %265 = vmatpush1.msra.mxu0 0.0
    %266 = vmatprep.subr.mxu0 0.0
    %267 = vmatpush1.msra.mxu0 0.0
    %268 = vmatprep.subr.mxu0 0.0
    %269 = vmatpush1.msra.mxu0 0.0
    %270 = vmatprep.subr.mxu0 0.0
    %271 = vmatpush1.msra.mxu0 0.0
    %272 = vmatprep.subr.mxu0 0.0
    %273 = vmatpush1.msra.mxu0 0.0
    %274 = vmatprep.subr.mxu0 0.0
    %275 = vmatpush1.msra.mxu0 0.0
    %276 = vmatprep.subr.mxu0 0.0
    %277 = vmatpush1.msra.mxu0 0.0
    %278 = vmatprep.subr.mxu0 0.0
    %279 = vmatpush1.msra.mxu0 0.0
    %280 = vmatprep.subr.mxu0 0.0
    %281 = vmatpush1.msra.mxu0 0.0
    %282 = vmatprep.subr.mxu0 0.0
    %283 = vmatpush1.msra.mxu0 0.0
    %284 = vmatprep.subr.mxu0 0.0
    %285 = vmatpush1.msra.mxu0 0.0
    %286 = vmatprep.subr.mxu0 0.0
    %287 = vmatpush1.msra.mxu0 0.0
    %288 = vmatprep.subr.mxu0 0.0
    %289 = vmatpush1.msra.mxu0 0.0
    %290 = vmatprep.subr.mxu0 0.0
    %291 = vmatpush1.msra.mxu0 0.0
    %292 = vmatprep.subr.mxu0 0.0
    %293 = vmatpush1.msra.mxu0 0.0
    %294 = vmatprep.subr.mxu0 0.0
    %295 = vmatpush1.msra.mxu0 0.0
    %296 = vmatprep.subr.mxu0 0.0
    %297 = vmatpush1.msra.mxu0 0.0
    %298 = vmatprep.subr.mxu0 0.0
    %299 = vmatpush1.msra.mxu0 0.0
    %300 = vmatprep.subr.mxu0 0.0
    %301 = vmatpush1.msra.mxu0 0.0
    %302 = vmatprep.subr.mxu0 0.0
    %303 = vmatpush1.msra.mxu0 0.0
    %304 = vmatprep.subr.mxu0 0.0
    %305 = vmatpush1.msra.mxu0 0.0
    %306 = vmatprep.subr.mxu0 0.0
    %307 = vmatpush1.msra.mxu0 0.0
    %308 = vmatprep.subr.mxu0 0.0
    %309 = vmatpush1.msra.mxu0 0.0
    %310 = vmatprep.subr.mxu0 0.0
    %311 = vmatpush1.msra.mxu0 0.0
    %312 = vmatprep.subr.mxu0 0.0
    %313 = vmatpush1.msra.mxu0 0.0
    %314 = vmatprep.subr.mxu0 0.0
    %315 = vmatpush1.msra.mxu0 0.0
    %316 = vmatprep.subr.mxu0 0.0
    %317 = vmatpush1.msra.mxu0 0.0
    %318 = vmatprep.subr.mxu0 0.0
    %319 = vmatpush1.msra.mxu0 0.0
    %320 = vmatprep.mubr.f32.mxu0 0.0
    %321 = vmatmul.mubr.f32.gmra.mrb[0].mxu0 %v254
    %v322 = vpop.f32.mrb[0].mxu0
    %v323 = vadd.f32 0.0, %v322
    %v324 = vpop.f32.mrb[0].mxu0
    %325 = vdwg.mxu0
    %v326 = vadd.f32 %v251, %v323
    %v327 = vtanh.pop %v326
    %v328 = vmul.f32 %v327, %v159
    %v329 = vadd.f32 %v328, %v160
    %331 = vrot.lane.b32.xlu0 %v250, 32
    %v332 = vpop.permute.xlu0 %331
    %v334 = vmul.f32 %v329, %v332
    %336 = vrot.lane.b32.xlu0 %v329, 64
    %v337 = vpop.permute.xlu0 %336
    %v339 = vmul.f32 %v329, %v337
    %341 = vrot.lane.b32.xlu0 %v339, 32
    %v342 = vpop.permute.xlu0 %341
    %v344 = vadd.f32 %v334, %v342
    %v345 = vtanh.pop %v344
    %347 = vrot.lane.b32.xlu0 %v345, 64
    %v348 = vpop.permute.xlu0 %347
    %v350 = vmul.f32 %v329, %v348
    %352 = vrot.lane.b32.xlu0 %v350, 32
    %v353 = vpop.permute.xlu0 %352
    %vm355 = vcmask 253952
    %356 = vst.msk [vmem:[#allocation3] sm:$0x1] %vm355, %v353
    %v357 = vld [vmem:[#allocation2 + $0x1] sm:$0x1]
    %v358 = vsel %vm252, %v353, 0
    %360 = vmatprep.subr.mxu0 0.0
    %361 = vmatpush1.msra.mxu0 %v161
    %362 = vmatprep.subr.mxu0 0.0
    %363 = vmatpush1.msra.mxu0 %v162
    %364 = vmatprep.subr.mxu0 0.0
    %365 = vmatpush1.msra.mxu0 %v163
    %366 = vmatprep.subr.mxu0 0.0
    %367 = vmatpush1.msra.mxu0 %v164
    %368 = vmatprep.subr.mxu0 0.0
    %369 = vmatpush1.msra.mxu0 0.0
    %370 = vmatprep.subr.mxu0 0.0
    %371 = vmatpush1.msra.mxu0 0.0
    %372 = vmatprep.subr.mxu0 0.0
    %373 = vmatpush1.msra.mxu0 0.0
    %374 = vmatprep.subr.mxu0 0.0
    %375 = vmatpush1.msra.mxu0 0.0
    %376 = vmatprep.subr.mxu0 0.0
    %377 = vmatpush1.msra.mxu0 0.0
    %378 = vmatprep.subr.mxu0 0.0
    %379 = vmatpush1.msra.mxu0 0.0
    %380 = vmatprep.subr.mxu0 0.0
    %381 = vmatpush1.msra.mxu0 0.0
    %382 = vmatprep.subr.mxu0 0.0
    %383 = vmatpush1.msra.mxu0 0.0
    %384 = vmatprep.subr.mxu0 0.0
    %385 = vmatpush1.msra.mxu0 0.0
    %386 = vmatprep.subr.mxu0 0.0
    %387 = vmatpush1.msra.mxu0 0.0
    %388 = vmatprep.subr.mxu0 0.0
    %389 = vmatpush1.msra.mxu0 0.0
    %390 = vmatprep.subr.mxu0 0.0
    %391 = vmatpush1.msra.mxu0 0.0
    %392 = vmatprep.subr.mxu0 0.0
    %393 = vmatpush1.msra.mxu0 0.0
    %394 = vmatprep.subr.mxu0 0.0
    %395 = vmatpush1.msra.mxu0 0.0
    %396 = vmatprep.subr.mxu0 0.0
    %397 = vmatpush1.msra.mxu0 0.0
    %398 = vmatprep.subr.mxu0 0.0
    %399 = vmatpush1.msra.mxu0 0.0
    %400 = vmatprep.subr.mxu0 0.0
    %401 = vmatpush1.msra.mxu0 0.0
    %402 = vmatprep.subr.mxu0 0.0
    %403 = vmatpush1.msra.mxu0 0.0
    %404 = vmatprep.subr.mxu0 0.0
    %405 = vmatpush1.msra.mxu0 0.0
    %406 = vmatprep.subr.mxu0 0.0
    %407 = vmatpush1.msra.mxu0 0.0
    %408 = vmatprep.subr.mxu0 0.0
    %409 = vmatpush1.msra.mxu0 0.0
    %410 = vmatprep.subr.mxu0 0.0
    %411 = vmatpush1.msra.mxu0 0.0
    %412 = vmatprep.subr.mxu0 0.0
    %413 = vmatpush1.msra.mxu0 0.0
    %414 = vmatprep.subr.mxu0 0.0
    %415 = vmatpush1.msra.mxu0 0.0
    %416 = vmatprep.subr.mxu0 0.0
    %417 = vmatpush1.msra.mxu0 0.0
    %418 = vmatprep.subr.mxu0 0.0
    %419 = vmatpush1.msra.mxu0 0.0
    %420 = vmatprep.subr.mxu0 0.0
    %421 = vmatpush1.msra.mxu0 0.0
    %422 = vmatprep.subr.mxu0 0.0
    %423 = vmatpush1.msra.mxu0 0.0
    %424 = vmatprep.mubr.f32.mxu0 0.0
    %425 = vmatmul.mubr.f32.gmra.mrb[0].mxu0 %v358
    %v426 = vpop.f32.mrb[0].mxu0
    %v427 = vadd.f32 0.0, %v426
    %v428 = vpop.f32.mrb[0].mxu0
    %429 = vdwg.mxu0
    %v430 = vadd.f32 %v357, %v427
    %v431 = vtanh.pop %v430
    %v432 = vmul.f32 %v431, %v159
    %v433 = vadd.f32 %v432, %v160
    %v434 = vmul.f32 %v433, %v344
    %436 = vrot.lane.b32.xlu0 %v433, 64
    %v437 = vpop.permute.xlu0 %436
    %v439 = vmul.f32 %v433, %v437
    %441 = vrot.lane.b32.xlu0 %v439, 32
    %v442 = vpop.permute.xlu0 %441
    %v444 = vadd.f32 %v434, %v442
    %v445 = vtanh.pop %v444
    %447 = vrot.lane.b32.xlu0 %v445, 64
    %v448 = vpop.permute.xlu0 %447
    %v450 = vmul.f32 %v433, %v448
    %452 = vrot.lane.b32.xlu0 %v450, 32
    %v453 = vpop.permute.xlu0 %452
    %455 = vst.msk [vmem:[#allocation3 + $0x1] sm:$0x1] %vm355, %v453
    %v456 = vld [vmem:[#allocation2 + $0x2] sm:$0x1]
    %v457 = vsel %vm252, %v453, 0
    %459 = vmatprep.subr.mxu0 0.0
    %460 = vmatpush1.msra.mxu0 %v161
    %461 = vmatprep.subr.mxu0 0.0
    %462 = vmatpush1.msra.mxu0 %v162
    %463 = vmatprep.subr.mxu0 0.0
    %464 = vmatpush1.msra.mxu0 %v163
    %465 = vmatprep.subr.mxu0 0.0
    %466 = vmatpush1.msra.mxu0 %v164
    %467 = vmatprep.subr.mxu0 0.0
    %468 = vmatpush1.msra.mxu0 0.0
    %469 = vmatprep.subr.mxu0 0.0
    %470 = vmatpush1.msra.mxu0 0.0
    %471 = vmatprep.subr.mxu0 0.0
    %472 = vmatpush1.msra.mxu0 0.0
    %473 = vmatprep.subr.mxu0 0.0
    %474 = vmatpush1.msra.mxu0 0.0
    %475 = vmatprep.subr.mxu0 0.0
    %476 = vmatpush1.msra.mxu0 0.0
    %477 = vmatprep.subr.mxu0 0.0
    %478 = vmatpush1.msra.mxu0 0.0
    %479 = vmatprep.subr.mxu0 0.0
    %480 = vmatpush1.msra.mxu0 0.0
    %481 = vmatprep.subr.mxu0 0.0
    %482 = vmatpush1.msra.mxu0 0.0
    %483 = vmatprep.subr.mxu0 0.0
    %484 = vmatpush1.msra.mxu0 0.0
    %485 = vmatprep.subr.mxu0 0.0
    %486 = vmatpush1.msra.mxu0 0.0
    %487 = vmatprep.subr.mxu0 0.0
    %488 = vmatpush1.msra.mxu0 0.0
    %489 = vmatprep.subr.mxu0 0.0
    %490 = vmatpush1.msra.mxu0 0.0
    %491 = vmatprep.subr.mxu0 0.0
    %492 = vmatpush1.msra.mxu0 0.0
    %493 = vmatprep.subr.mxu0 0.0
    %494 = vmatpush1.msra.mxu0 0.0
    %495 = vmatprep.subr.mxu0 0.0
    %496 = vmatpush1.msra.mxu0 0.0
    %497 = vmatprep.subr.mxu0 0.0
    %498 = vmatpush1.msra.mxu0 0.0
    %499 = vmatprep.subr.mxu0 0.0
    %500 = vmatpush1.msra.mxu0 0.0
    %501 = vmatprep.subr.mxu0 0.0
    %502 = vmatpush1.msra.mxu0 0.0
    %503 = vmatprep.subr.mxu0 0.0
    %504 = vmatpush1.msra.mxu0 0.0
    %505 = vmatprep.subr.mxu0 0.0
    %506 = vmatpush1.msra.mxu0 0.0
    %507 = vmatprep.subr.mxu0 0.0
    %508 = vmatpush1.msra.mxu0 0.0
    %509 = vmatprep.subr.mxu0 0.0
    %510 = vmatpush1.msra.mxu0 0.0
    %511 = vmatprep.subr.mxu0 0.0
    %512 = vmatpush1.msra.mxu0 0.0
    %513 = vmatprep.subr.mxu0 0.0
    %514 = vmatpush1.msra.mxu0 0.0
    %515 = vmatprep.subr.mxu0 0.0
    %516 = vmatpush1.msra.mxu0 0.0
    %517 = vmatprep.subr.mxu0 0.0
    %518 = vmatpush1.msra.mxu0 0.0
    %519 = vmatprep.subr.mxu0 0.0
    %520 = vmatpush1.msra.mxu0 0.0
    %521 = vmatprep.subr.mxu0 0.0
    %522 = vmatpush1.msra.mxu0 0.0
    %523 = vmatprep.mubr.f32.mxu0 0.0
    %524 = vmatmul.mubr.f32.gmra.mrb[0].mxu0 %v457
    %v525 = vpop.f32.mrb[0].mxu0
    %v526 = vadd.f32 0.0, %v525
    %v527 = vpop.f32.mrb[0].mxu0
    %528 = vdwg.mxu0
    %v529 = vadd.f32 %v456, %v526
    %v530 = vtanh.pop %v529
    %v531 = vmul.f32 %v530, %v159
    %v532 = vadd.f32 %v531, %v160
    %v533 = vmul.f32 %v532, %v444
    %535 = vrot.lane.b32.xlu0 %v532, 64
    %v536 = vpop.permute.xlu0 %535
    %v538 = vmul.f32 %v532, %v536
    %540 = vrot.lane.b32.xlu0 %v538, 32
    %v541 = vpop.permute.xlu0 %540
    %v543 = vadd.f32 %v533, %v541
    %v544 = vtanh.pop %v543
    %546 = vrot.lane.b32.xlu0 %v544, 64
    %v547 = vpop.permute.xlu0 %546
    %v549 = vmul.f32 %v532, %v547
    %551 = vrot.lane.b32.xlu0 %v549, 32
    %v552 = vpop.permute.xlu0 %551
    %554 = vst.msk [vmem:[#allocation3 + $0x2] sm:$0x1] %vm355, %v552
    %v555 = vld [vmem:[#allocation2 + $0x3] sm:$0x1]
    %v556 = vsel %vm252, %v552, 0
    %558 = vmatprep.subr.mxu0 0.0
    %559 = vmatpush1.msra.mxu0 %v161
    %560 = vmatprep.subr.mxu0 0.0
    %561 = vmatpush1.msra.mxu0 %v162
    %562 = vmatprep.subr.mxu0 0.0
    %563 = vmatpush1.msra.mxu0 %v163
    %564 = vmatprep.subr.mxu0 0.0
    %565 = vmatpush1.msra.mxu0 %v164
    %566 = vmatprep.subr.mxu0 0.0
    %567 = vmatpush1.msra.mxu0 0.0
    %568 = vmatprep.subr.mxu0 0.0
    %569 = vmatpush1.msra.mxu0 0.0
    %570 = vmatprep.subr.mxu0 0.0
    %571 = vmatpush1.msra.mxu0 0.0
    %572 = vmatprep.subr.mxu0 0.0
    %573 = vmatpush1.msra.mxu0 0.0
    %574 = vmatprep.subr.mxu0 0.0
    %575 = vmatpush1.msra.mxu0 0.0
    %576 = vmatprep.subr.mxu0 0.0
    %577 = vmatpush1.msra.mxu0 0.0
    %578 = vmatprep.subr.mxu0 0.0
    %579 = vmatpush1.msra.mxu0 0.0
    %580 = vmatprep.subr.mxu0 0.0
    %581 = vmatpush1.msra.mxu0 0.0
    %582 = vmatprep.subr.mxu0 0.0
    %583 = vmatpush1.msra.mxu0 0.0
    %584 = vmatprep.subr.mxu0 0.0
    %585 = vmatpush1.msra.mxu0 0.0
    %586 = vmatprep.subr.mxu0 0.0
    %587 = vmatpush1.msra.mxu0 0.0
    %588 = vmatprep.subr.mxu0 0.0
    %589 = vmatpush1.msra.mxu0 0.0
    %590 = vmatprep.subr.mxu0 0.0
    %591 = vmatpush1.msra.mxu0 0.0
    %592 = vmatprep.subr.mxu0 0.0
    %593 = vmatpush1.msra.mxu0 0.0
    %594 = vmatprep.subr.mxu0 0.0
    %595 = vmatpush1.msra.mxu0 0.0
    %596 = vmatprep.subr.mxu0 0.0
    %597 = vmatpush1.msra.mxu0 0.0
    %598 = vmatprep.subr.mxu0 0.0
    %599 = vmatpush1.msra.mxu0 0.0
    %600 = vmatprep.subr.mxu0 0.0
    %601 = vmatpush1.msra.mxu0 0.0
    %602 = vmatprep.subr.mxu0 0.0
    %603 = vmatpush1.msra.mxu0 0.0
    %604 = vmatprep.subr.mxu0 0.0
    %605 = vmatpush1.msra.mxu0 0.0
    %606 = vmatprep.subr.mxu0 0.0
    %607 = vmatpush1.msra.mxu0 0.0
    %608 = vmatprep.subr.mxu0 0.0
    %609 = vmatpush1.msra.mxu0 0.0
    %610 = vmatprep.subr.mxu0 0.0
    %611 = vmatpush1.msra.mxu0 0.0
    %612 = vmatprep.subr.mxu0 0.0
    %613 = vmatpush1.msra.mxu0 0.0
    %614 = vmatprep.subr.mxu0 0.0
    %615 = vmatpush1.msra.mxu0 0.0
    %616 = vmatprep.subr.mxu0 0.0
    %617 = vmatpush1.msra.mxu0 0.0
    %618 = vmatprep.subr.mxu0 0.0
    %619 = vmatpush1.msra.mxu0 0.0
    %620 = vmatprep.subr.mxu0 0.0
    %621 = vmatpush1.msra.mxu0 0.0
    %622 = vmatprep.mubr.f32.mxu0 0.0
    %623 = vmatmul.mubr.f32.gmra.mrb[0].mxu0 %v556
    %v624 = vpop.f32.mrb[0].mxu0
    %v625 = vadd.f32 0.0, %v624
    %v626 = vpop.f32.mrb[0].mxu0
    %627 = vdwg.mxu0
    %v628 = vadd.f32 %v555, %v625
    %v629 = vtanh.pop %v628
    %v630 = vmul.f32 %v629, %v159
    %v631 = vadd.f32 %v630, %v160
    %v632 = vmul.f32 %v631, %v543
    %634 = vrot.lane.b32.xlu0 %v631, 64
    %v635 = vpop.permute.xlu0 %634
    %v637 = vmul.f32 %v631, %v635
    %639 = vrot.lane.b32.xlu0 %v637, 32
    %v640 = vpop.permute.xlu0 %639
    %v642 = vadd.f32 %v632, %v640
    %v643 = vtanh.pop %v642
    %645 = vrot.lane.b32.xlu0 %v643, 64
    %v646 = vpop.permute.xlu0 %645
    %v648 = vmul.f32 %v631, %v646
    %650 = vrot.lane.b32.xlu0 %v648, 32
    %v651 = vpop.permute.xlu0 %650
    %653 = vst.msk [vmem:[#allocation3 + $0x3] sm:$0x1] %vm355, %v651
    %v654 = vld [vmem:[#allocation2 + $0x4] sm:$0x1]
    %v655 = vsel %vm252, %v651, 0
    %657 = vmatprep.subr.mxu0 0.0
    %658 = vmatpush1.msra.mxu0 %v161
    %659 = vmatprep.subr.mxu0 0.0
    %660 = vmatpush1.msra.mxu0 %v162
    %661 = vmatprep.subr.mxu0 0.0
    %662 = vmatpush1.msra.mxu0 %v163
    %663 = vmatprep.subr.mxu0 0.0
    %664 = vmatpush1.msra.mxu0 %v164
    %665 = vmatprep.subr.mxu0 0.0
    %666 = vmatpush1.msra.mxu0 0.0
    %667 = vmatprep.subr.mxu0 0.0
    %668 = vmatpush1.msra.mxu0 0.0
    %669 = vmatprep.subr.mxu0 0.0
    %670 = vmatpush1.msra.mxu0 0.0
    %671 = vmatprep.subr.mxu0 0.0
    %672 = vmatpush1.msra.mxu0 0.0
    %673 = vmatprep.subr.mxu0 0.0
    %674 = vmatpush1.msra.mxu0 0.0
    %675 = vmatprep.subr.mxu0 0.0
    %676 = vmatpush1.msra.mxu0 0.0
    %677 = vmatprep.subr.mxu0 0.0
    %678 = vmatpush1.msra.mxu0 0.0
    %679 = vmatprep.subr.mxu0 0.0
    %680 = vmatpush1.msra.mxu0 0.0
    %681 = vmatprep.subr.mxu0 0.0
    %682 = vmatpush1.msra.mxu0 0.0
    %683 = vmatprep.subr.mxu0 0.0
    %684 = vmatpush1.msra.mxu0 0.0
    %685 = vmatprep.subr.mxu0 0.0
    %686 = vmatpush1.msra.mxu0 0.0
    %687 = vmatprep.subr.mxu0 0.0
    %688 = vmatpush1.msra.mxu0 0.0
    %689 = vmatprep.subr.mxu0 0.0
    %690 = vmatpush1.msra.mxu0 0.0
    %691 = vmatprep.subr.mxu0 0.0
    %692 = vmatpush1.msra.mxu0 0.0
    %693 = vmatprep.subr.mxu0 0.0
    %694 = vmatpush1.msra.mxu0 0.0
    %695 = vmatprep.subr.mxu0 0.0
    %696 = vmatpush1.msra.mxu0 0.0
    %697 = vmatprep.subr.mxu0 0.0
    %698 = vmatpush1.msra.mxu0 0.0
    %699 = vmatprep.subr.mxu0 0.0
    %700 = vmatpush1.msra.mxu0 0.0
    %701 = vmatprep.subr.mxu0 0.0
    %702 = vmatpush1.msra.mxu0 0.0
    %703 = vmatprep.subr.mxu0 0.0
    %704 = vmatpush1.msra.mxu0 0.0
    %705 = vmatprep.subr.mxu0 0.0
    %706 = vmatpush1.msra.mxu0 0.0
    %707 = vmatprep.subr.mxu0 0.0
    %708 = vmatpush1.msra.mxu0 0.0
    %709 = vmatprep.subr.mxu0 0.0
    %710 = vmatpush1.msra.mxu0 0.0
    %711 = vmatprep.subr.mxu0 0.0
    %712 = vmatpush1.msra.mxu0 0.0
    %713 = vmatprep.subr.mxu0 0.0
    %714 = vmatpush1.msra.mxu0 0.0
    %715 = vmatprep.subr.mxu0 0.0
    %716 = vmatpush1.msra.mxu0 0.0
    %717 = vmatprep.subr.mxu0 0.0
    %718 = vmatpush1.msra.mxu0 0.0
    %719 = vmatprep.subr.mxu0 0.0
    %720 = vmatpush1.msra.mxu0 0.0
    %721 = vmatprep.mubr.f32.mxu0 0.0
    %722 = vmatmul.mubr.f32.gmra.mrb[0].mxu0 %v655
    %v723 = vpop.f32.mrb[0].mxu0
    %v724 = vadd.f32 0.0, %v723
    %v725 = vpop.f32.mrb[0].mxu0
    %726 = vdwg.mxu0
    %v727 = vadd.f32 %v654, %v724
    %v728 = vtanh.pop %v727
    %v729 = vmul.f32 %v728, %v159
    %v730 = vadd.f32 %v729, %v160
    %v731 = vmul.f32 %v730, %v642
    %733 = vrot.lane.b32.xlu0 %v730, 64
    %v734 = vpop.permute.xlu0 %733
    %v736 = vmul.f32 %v730, %v734
    %738 = vrot.lane.b32.xlu0 %v736, 32
    %v739 = vpop.permute.xlu0 %738
    %v741 = vadd.f32 %v731, %v739
    %v742 = vtanh.pop %v741
    %744 = vrot.lane.b32.xlu0 %v742, 64
    %v745 = vpop.permute.xlu0 %744
    %v747 = vmul.f32 %v730, %v745
    %749 = vrot.lane.b32.xlu0 %v747, 32
    %v750 = vpop.permute.xlu0 %749
    %752 = vst.msk [vmem:[#allocation3 + $0x4] sm:$0x1] %vm355, %v750
    %v753 = vld [vmem:[#allocation2 + $0x5] sm:$0x1]
    %v754 = vsel %vm252, %v750, 0
    %756 = vmatprep.subr.mxu0 0.0
    %757 = vmatpush1.msra.mxu0 %v161
    %758 = vmatprep.subr.mxu0 0.0
    %759 = vmatpush1.msra.mxu0 %v162
    %760 = vmatprep.subr.mxu0 0.0
    %761 = vmatpush1.msra.mxu0 %v163
    %762 = vmatprep.subr.mxu0 0.0
    %763 = vmatpush1.msra.mxu0 %v164
    %764 = vmatprep.subr.mxu0 0.0
    %765 = vmatpush1.msra.mxu0 0.0
    %766 = vmatprep.subr.mxu0 0.0
    %767 = vmatpush1.msra.mxu0 0.0
    %768 = vmatprep.subr.mxu0 0.0
    %769 = vmatpush1.msra.mxu0 0.0
    %770 = vmatprep.subr.mxu0 0.0
    %771 = vmatpush1.msra.mxu0 0.0
    %772 = vmatprep.subr.mxu0 0.0
    %773 = vmatpush1.msra.mxu0 0.0
    %774 = vmatprep.subr.mxu0 0.0
    %775 = vmatpush1.msra.mxu0 0.0
    %776 = vmatprep.subr.mxu0 0.0
    %777 = vmatpush1.msra.mxu0 0.0
    %778 = vmatprep.subr.mxu0 0.0
    %779 = vmatpush1.msra.mxu0 0.0
    %780 = vmatprep.subr.mxu0 0.0
    %781 = vmatpush1.msra.mxu0 0.0
    %782 = vmatprep.subr.mxu0 0.0
    %783 = vmatpush1.msra.mxu0 0.0
    %784 = vmatprep.subr.mxu0 0.0
    %785 = vmatpush1.msra.mxu0 0.0
    %786 = vmatprep.subr.mxu0 0.0
    %787 = vmatpush1.msra.mxu0 0.0
    %788 = vmatprep.subr.mxu0 0.0
    %789 = vmatpush1.msra.mxu0 0.0
    %790 = vmatprep.subr.mxu0 0.0
    %791 = vmatpush1.msra.mxu0 0.0
    %792 = vmatprep.subr.mxu0 0.0
    %793 = vmatpush1.msra.mxu0 0.0
    %794 = vmatprep.subr.mxu0 0.0
    %795 = vmatpush1.msra.mxu0 0.0
    %796 = vmatprep.subr.mxu0 0.0
    %797 = vmatpush1.msra.mxu0 0.0
    %798 = vmatprep.subr.mxu0 0.0
    %799 = vmatpush1.msra.mxu0 0.0
    %800 = vmatprep.subr.mxu0 0.0
    %801 = vmatpush1.msra.mxu0 0.0
    %802 = vmatprep.subr.mxu0 0.0
    %803 = vmatpush1.msra.mxu0 0.0
    %804 = vmatprep.subr.mxu0 0.0
    %805 = vmatpush1.msra.mxu0 0.0
    %806 = vmatprep.subr.mxu0 0.0
    %807 = vmatpush1.msra.mxu0 0.0
    %808 = vmatprep.subr.mxu0 0.0
    %809 = vmatpush1.msra.mxu0 0.0
    %810 = vmatprep.subr.mxu0 0.0
    %811 = vmatpush1.msra.mxu0 0.0
    %812 = vmatprep.subr.mxu0 0.0
    %813 = vmatpush1.msra.mxu0 0.0
    %814 = vmatprep.subr.mxu0 0.0
    %815 = vmatpush1.msra.mxu0 0.0
    %816 = vmatprep.subr.mxu0 0.0
    %817 = vmatpush1.msra.mxu0 0.0
    %818 = vmatprep.subr.mxu0 0.0
    %819 = vmatpush1.msra.mxu0 0.0
    %820 = vmatprep.mubr.f32.mxu0 0.0
    %821 = vmatmul.mubr.f32.gmra.mrb[0].mxu0 %v754
    %v822 = vpop.f32.mrb[0].mxu0
    %v823 = vadd.f32 0.0, %v822
    %v824 = vpop.f32.mrb[0].mxu0
    %825 = vdwg.mxu0
    %v826 = vadd.f32 %v753, %v823
    %v827 = vtanh.pop %v826
    %v828 = vmul.f32 %v827, %v159
    %v829 = vadd.f32 %v828, %v160
    %v830 = vmul.f32 %v829, %v741
    %832 = vrot.lane.b32.xlu0 %v829, 64
    %v833 = vpop.permute.xlu0 %832
    %v835 = vmul.f32 %v829, %v833
    %837 = vrot.lane.b32.xlu0 %v835, 32
    %v838 = vpop.permute.xlu0 %837
    %v840 = vadd.f32 %v830, %v838
    %v841 = vtanh.pop %v840
    %843 = vrot.lane.b32.xlu0 %v841, 64
    %v844 = vpop.permute.xlu0 %843
    %v846 = vmul.f32 %v829, %v844
    %848 = vrot.lane.b32.xlu0 %v846, 32
    %v849 = vpop.permute.xlu0 %848
    %851 = vst.msk [vmem:[#allocation3 + $0x5] sm:$0x1] %vm355, %v849
    %v852 = vld [vmem:[#allocation2 + $0x6] sm:$0x1]
    %v853 = vsel %vm252, %v849, 0
    %855 = vmatprep.subr.mxu0 0.0
    %856 = vmatpush1.msra.mxu0 %v161
    %857 = vmatprep.subr.mxu0 0.0
    %858 = vmatpush1.msra.mxu0 %v162
    %859 = vmatprep.subr.mxu0 0.0
    %860 = vmatpush1.msra.mxu0 %v163
    %861 = vmatprep.subr.mxu0 0.0
    %862 = vmatpush1.msra.mxu0 %v164
    %863 = vmatprep.subr.mxu0 0.0
    %864 = vmatpush1.msra.mxu0 0.0
    %865 = vmatprep.subr.mxu0 0.0
    %866 = vmatpush1.msra.mxu0 0.0
    %867 = vmatprep.subr.mxu0 0.0
    %868 = vmatpush1.msra.mxu0 0.0
    %869 = vmatprep.subr.mxu0 0.0
    %870 = vmatpush1.msra.mxu0 0.0
    %871 = vmatprep.subr.mxu0 0.0
    %872 = vmatpush1.msra.mxu0 0.0
    %873 = vmatprep.subr.mxu0 0.0
    %874 = vmatpush1.msra.mxu0 0.0
    %875 = vmatprep.subr.mxu0 0.0
    %876 = vmatpush1.msra.mxu0 0.0
    %877 = vmatprep.subr.mxu0 0.0
    %878 = vmatpush1.msra.mxu0 0.0
    %879 = vmatprep.subr.mxu0 0.0
    %880 = vmatpush1.msra.mxu0 0.0
    %881 = vmatprep.subr.mxu0 0.0
    %882 = vmatpush1.msra.mxu0 0.0
    %883 = vmatprep.subr.mxu0 0.0
    %884 = vmatpush1.msra.mxu0 0.0
    %885 = vmatprep.subr.mxu0 0.0
    %886 = vmatpush1.msra.mxu0 0.0
    %887 = vmatprep.subr.mxu0 0.0
    %888 = vmatpush1.msra.mxu0 0.0
    %889 = vmatprep.subr.mxu0 0.0
    %890 = vmatpush1.msra.mxu0 0.0
    %891 = vmatprep.subr.mxu0 0.0
    %892 = vmatpush1.msra.mxu0 0.0
    %893 = vmatprep.subr.mxu0 0.0
    %894 = vmatpush1.msra.mxu0 0.0
    %895 = vmatprep.subr.mxu0 0.0
    %896 = vmatpush1.msra.mxu0 0.0
    %897 = vmatprep.subr.mxu0 0.0
    %898 = vmatpush1.msra.mxu0 0.0
    %899 = vmatprep.subr.mxu0 0.0
    %900 = vmatpush1.msra.mxu0 0.0
    %901 = vmatprep.subr.mxu0 0.0
    %902 = vmatpush1.msra.mxu0 0.0
    %903 = vmatprep.subr.mxu0 0.0
    %904 = vmatpush1.msra.mxu0 0.0
    %905 = vmatprep.subr.mxu0 0.0
    %906 = vmatpush1.msra.mxu0 0.0
    %907 = vmatprep.subr.mxu0 0.0
    %908 = vmatpush1.msra.mxu0 0.0
    %909 = vmatprep.subr.mxu0 0.0
    %910 = vmatpush1.msra.mxu0 0.0
    %911 = vmatprep.subr.mxu0 0.0
    %912 = vmatpush1.msra.mxu0 0.0
    %913 = vmatprep.subr.mxu0 0.0
    %914 = vmatpush1.msra.mxu0 0.0
    %915 = vmatprep.subr.mxu0 0.0
    %916 = vmatpush1.msra.mxu0 0.0
    %917 = vmatprep.subr.mxu0 0.0
    %918 = vmatpush1.msra.mxu0 0.0
    %919 = vmatprep.mubr.f32.mxu0 0.0
    %920 = vmatmul.mubr.f32.gmra.mrb[0].mxu0 %v853
    %v921 = vpop.f32.mrb[0].mxu0
    %v922 = vadd.f32 0.0, %v921
    %v923 = vpop.f32.mrb[0].mxu0
    %924 = vdwg.mxu0
    %v925 = vadd.f32 %v852, %v922
    %v926 = vtanh.pop %v925
    %v927 = vmul.f32 %v926, %v159
    %v928 = vadd.f32 %v927, %v160
    %v929 = vmul.f32 %v928, %v840
    %931 = vrot.lane.b32.xlu0 %v928, 64
    %v932 = vpop.permute.xlu0 %931
    %v934 = vmul.f32 %v928, %v932
    %936 = vrot.lane.b32.xlu0 %v934, 32
    %v937 = vpop.permute.xlu0 %936
    %v939 = vadd.f32 %v929, %v937
    %v940 = vtanh.pop %v939
    %942 = vrot.lane.b32.xlu0 %v940, 64
    %v943 = vpop.permute.xlu0 %942
    %v945 = vmul.f32 %v928, %v943
    %947 = vrot.lane.b32.xlu0 %v945, 32
    %v948 = vpop.permute.xlu0 %947
    %950 = vst.msk [vmem:[#allocation3 + $0x6] sm:$0x1] %vm355, %v948
    %v951 = vld [vmem:[#allocation2 + $0x7] sm:$0x1]
    %v952 = vsel %vm252, %v948, 0
    %954 = vmatprep.subr.mxu0 0.0
    %955 = vmatpush1.msra.mxu0 %v161
    %956 = vmatprep.subr.mxu0 0.0
    %957 = vmatpush1.msra.mxu0 %v162
    %958 = vmatprep.subr.mxu0 0.0
    %959 = vmatpush1.msra.mxu0 %v163
    %960 = vmatprep.subr.mxu0 0.0
    %961 = vmatpush1.msra.mxu0 %v164
    %962 = vmatprep.subr.mxu0 0.0
    %963 = vmatpush1.msra.mxu0 0.0
    %964 = vmatprep.subr.mxu0 0.0
    %965 = vmatpush1.msra.mxu0 0.0
    %966 = vmatprep.subr.mxu0 0.0
    %967 = vmatpush1.msra.mxu0 0.0
    %968 = vmatprep.subr.mxu0 0.0
    %969 = vmatpush1.msra.mxu0 0.0
    %970 = vmatprep.subr.mxu0 0.0
    %971 = vmatpush1.msra.mxu0 0.0
    %972 = vmatprep.subr.mxu0 0.0
    %973 = vmatpush1.msra.mxu0 0.0
    %974 = vmatprep.subr.mxu0 0.0
    %975 = vmatpush1.msra.mxu0 0.0
    %976 = vmatprep.subr.mxu0 0.0
    %977 = vmatpush1.msra.mxu0 0.0
    %978 = vmatprep.subr.mxu0 0.0
    %979 = vmatpush1.msra.mxu0 0.0
    %980 = vmatprep.subr.mxu0 0.0
    %981 = vmatpush1.msra.mxu0 0.0
    %982 = vmatprep.subr.mxu0 0.0
    %983 = vmatpush1.msra.mxu0 0.0
    %984 = vmatprep.subr.mxu0 0.0
    %985 = vmatpush1.msra.mxu0 0.0
    %986 = vmatprep.subr.mxu0 0.0
    %987 = vmatpush1.msra.mxu0 0.0
    %988 = vmatprep.subr.mxu0 0.0
    %989 = vmatpush1.msra.mxu0 0.0
    %990 = vmatprep.subr.mxu0 0.0
    %991 = vmatpush1.msra.mxu0 0.0
    %992 = vmatprep.subr.mxu0 0.0
    %993 = vmatpush1.msra.mxu0 0.0
    %994 = vmatprep.subr.mxu0 0.0
    %995 = vmatpush1.msra.mxu0 0.0
    %996 = vmatprep.subr.mxu0 0.0
    %997 = vmatpush1.msra.mxu0 0.0
    %998 = vmatprep.subr.mxu0 0.0
    %999 = vmatpush1.msra.mxu0 0.0
    %1000 = vmatprep.subr.mxu0 0.0
    %1001 = vmatpush1.msra.mxu0 0.0
    %1002 = vmatprep.subr.mxu0 0.0
    %1003 = vmatpush1.msra.mxu0 0.0
    %1004 = vmatprep.subr.mxu0 0.0
    %1005 = vmatpush1.msra.mxu0 0.0
    %1006 = vmatprep.subr.mxu0 0.0
    %1007 = vmatpush1.msra.mxu0 0.0
    %1008 = vmatprep.subr.mxu0 0.0
    %1009 = vmatpush1.msra.mxu0 0.0
    %1010 = vmatprep.subr.mxu0 0.0
    %1011 = vmatpush1.msra.mxu0 0.0
    %1012 = vmatprep.subr.mxu0 0.0
    %1013 = vmatpush1.msra.mxu0 0.0
    %1014 = vmatprep.subr.mxu0 0.0
    %1015 = vmatpush1.msra.mxu0 0.0
    %1016 = vmatprep.subr.mxu0 0.0
    %1017 = vmatpush1.msra.mxu0 0.0
    %1018 = vmatprep.mubr.f32.mxu0 0.0
    %1019 = vmatmul.mubr.f32.gmra.mrb[0].mxu0 %v952
    %v1020 = vpop.f32.mrb[0].mxu0
    %v1021 = vadd.f32 0.0, %v1020
    %v1022 = vpop.f32.mrb[0].mxu0
    %1023 = vdwg.mxu0
    %v1024 = vadd.f32 %v951, %v1021
    %v1025 = vtanh.pop %v1024
    %v1026 = vmul.f32 %v1025, %v159
    %v1027 = vadd.f32 %v1026, %v160
    %v1028 = vmul.f32 %v1027, %v939
    %1030 = vrot.lane.b32.xlu0 %v1027, 64
    %v1031 = vpop.permute.xlu0 %1030
    %v1033 = vmul.f32 %v1027, %v1031
    %1035 = vrot.lane.b32.xlu0 %v1033, 32
    %v1036 = vpop.permute.xlu0 %1035
    %v1038 = vadd.f32 %v1028, %v1036
    %v1039 = vtanh.pop %v1038
    %1041 = vrot.lane.b32.xlu0 %v1039, 64
    %v1042 = vpop.permute.xlu0 %1041
    %v1044 = vmul.f32 %v1027, %v1042
    %1046 = vrot.lane.b32.xlu0 %v1044, 32
    %v1047 = vpop.permute.xlu0 %1046
    %1049 = vst.msk [vmem:[#allocation3 + $0x7] sm:$0x1] %vm355, %v1047
    %1050 = vst.msk [vmem:[#allocation20] sm:$0x1] %vm355, %v1047
    %1052 = vrot.lane.b32.xlu0 %v1038, 96
    %v1053 = vpop.permute.xlu0 %1052
    %1055 = vst.msk [vmem:[#allocation22] sm:$0x1] %vm355, %v1053
    %v1056 = vld [vmem:[%s9] sm:$0xff]
    %v1057 = vld [vmem:[%s9 + $0x8] sm:$0xff]
    %v1058 = vld [vmem:[%s9 + $0x10] sm:$0xff]
    %v1059 = vld [vmem:[%s9 + $0x18] sm:$0xff]
    %v1060 = vld [vmem:[#allocation3] sm:$0xff]
    %v1061 = vld [vmem:[#allocation16] sm:$0xff]
    %v1062 = vld [vmem:[#allocation16 + $0x8] sm:$0xff]
    %v1063 = vld [vmem:[#allocation16 + $0x10] sm:$0xff]
    %v1064 = vld [vmem:[#allocation16 + $0x18] sm:$0xff]
    %v1065 = vld [vmem:[%s10] sm:$0x1]
    %v1067 = vlaneseq
    %v1068 = vshrl.u32 %v1067, 7
    %v1069 = vsub.s32 0, %v1068
    %v1070 = vrot.slane %v1065, %v1069
    %v1073 = vsel %vm252, %v1060, 0
    %1075 = vmatprep.subr.mxu0 0.0
    %1076 = vmatpush1.msra.mxu0 %v1061
    %1077 = vmatprep.subr.mxu0 0.0
    %1078 = vmatpush1.msra.mxu0 %v1062
    %1079 = vmatprep.subr.mxu0 0.0
    %1080 = vmatpush1.msra.mxu0 %v1063
    %1081 = vmatprep.subr.mxu0 0.0
    %1082 = vmatpush1.msra.mxu0 %v1064
    %1083 = vmatprep.subr.mxu0 0.0
    %1084 = vmatpush1.msra.mxu0 0.0
    %1085 = vmatprep.subr.mxu0 0.0
    %1086 = vmatpush1.msra.mxu0 0.0
    %1087 = vmatprep.subr.mxu0 0.0
    %1088 = vmatpush1.msra.mxu0 0.0
    %1089 = vmatprep.subr.mxu0 0.0
    %1090 = vmatpush1.msra.mxu0 0.0
    %1091 = vmatprep.subr.mxu0 0.0
    %1092 = vmatpush1.msra.mxu0 0.0
    %1093 = vmatprep.subr.mxu0 0.0
    %1094 = vmatpush1.msra.mxu0 0.0
    %1095 = vmatprep.subr.mxu0 0.0
    %1096 = vmatpush1.msra.mxu0 0.0
    %1097 = vmatprep.subr.mxu0 0.0
    %1098 = vmatpush1.msra.mxu0 0.0
    %1099 = vmatprep.subr.mxu0 0.0
    %1100 = vmatpush1.msra.mxu0 0.0
    %1101 = vmatprep.subr.mxu0 0.0
    %1102 = vmatpush1.msra.mxu0 0.0
    %1103 = vmatprep.subr.mxu0 0.0
    %1104 = vmatpush1.msra.mxu0 0.0
    %1105 = vmatprep.subr.mxu0 0.0
    %1106 = vmatpush1.msra.mxu0 0.0
    %1107 = vmatprep.subr.mxu0 0.0
    %1108 = vmatpush1.msra.mxu0 0.0
    %1109 = vmatprep.subr.mxu0 0.0
    %1110 = vmatpush1.msra.mxu0 0.0
    %1111 = vmatprep.subr.mxu0 0.0
    %1112 = vmatpush1.msra.mxu0 0.0
    %1113 = vmatprep.subr.mxu0 0.0
    %1114 = vmatpush1.msra.mxu0 0.0
    %1115 = vmatprep.subr.mxu0 0.0
    %1116 = vmatpush1.msra.mxu0 0.0
    %1117 = vmatprep.subr.mxu0 0.0
    %1118 = vmatpush1.msra.mxu0 0.0
    %1119 = vmatprep.subr.mxu0 0.0
    %1120 = vmatpush1.msra.mxu0 0.0
    %1121 = vmatprep.subr.mxu0 0.0
    %1122 = vmatpush1.msra.mxu0 0.0
    %1123 = vmatprep.subr.mxu0 0.0
    %1124 = vmatpush1.msra.mxu0 0.0
    %1125 = vmatprep.subr.mxu0 0.0
    %1126 = vmatpush1.msra.mxu0 0.0
    %1127 = vmatprep.subr.mxu0 0.0
    %1128 = vmatpush1.msra.mxu0 0.0
    %1129 = vmatprep.subr.mxu0 0.0
    %1130 = vmatpush1.msra.mxu0 0.0
    %1131 = vmatprep.subr.mxu0 0.0
    %1132 = vmatpush1.msra.mxu0 0.0
    %1133 = vmatprep.subr.mxu0 0.0
    %1134 = vmatpush1.msra.mxu0 0.0
    %1135 = vmatprep.subr.mxu0 0.0
    %1136 = vmatpush1.msra.mxu0 0.0
    %1137 = vmatprep.subr.mxu0 0.0
    %1138 = vmatpush1.msra.mxu0 0.0
    %1139 = vmatprep.mubr.f32.mxu0 0.0
    %1140 = vmatmul.mubr.f32.gmra.mrb[0].mxu0 %v1073
    %v1141 = vpop.f32.mrb[0].mxu0
    %v1142 = vadd.f32 %v1070, %v1141
    %v1143 = vpop.f32.mrb[0].mxu0
    %1144 = vdwg.mxu0
    %1145 = vst [vmem:[#allocation2] sm:$0xff] %v1142
    %v1146 = vld [vmem:[%s1 + $0x1] sm:$0x1]
    %v1147 = vld [vmem:[#allocation7 + $0x1] sm:$0x1]
    %v1148 = vld [vmem:[#allocation2] sm:$0x1]
    %v1150 = vsel %vm252, %v1146, 0
    %1152 = vmatprep.subr.mxu0 0.0
    %1153 = vmatpush1.msra.mxu0 %v1056
    %1154 = vmatprep.subr.mxu0 0.0
    %1155 = vmatpush1.msra.mxu0 %v1057
    %1156 = vmatprep.subr.mxu0 0.0
    %1157 = vmatpush1.msra.mxu0 %v1058
    %1158 = vmatprep.subr.mxu0 0.0
    %1159 = vmatpush1.msra.mxu0 %v1059
    %1160 = vmatprep.subr.mxu0 0.0
    %1161 = vmatpush1.msra.mxu0 0.0
    %1162 = vmatprep.subr.mxu0 0.0
    %1163 = vmatpush1.msra.mxu0 0.0
    %1164 = vmatprep.subr.mxu0 0.0
    %1165 = vmatpush1.msra.mxu0 0.0
    %1166 = vmatprep.subr.mxu0 0.0
    %1167 = vmatpush1.msra.mxu0 0.0
    %1168 = vmatprep.subr.mxu0 0.0
    %1169 = vmatpush1.msra.mxu0 0.0
    %1170 = vmatprep.subr.mxu0 0.0
    %1171 = vmatpush1.msra.mxu0 0.0
    %1172 = vmatprep.subr.mxu0 0.0
    %1173 = vmatpush1.msra.mxu0 0.0
    %1174 = vmatprep.subr.mxu0 0.0
    %1175 = vmatpush1.msra.mxu0 0.0
    %1176 = vmatprep.subr.mxu0 0.0
    %1177 = vmatpush1.msra.mxu0 0.0
    %1178 = vmatprep.subr.mxu0 0.0
    %1179 = vmatpush1.msra.mxu0 0.0
    %1180 = vmatprep.subr.mxu0 0.0
    %1181 = vmatpush1.msra.mxu0 0.0
    %1182 = vmatprep.subr.mxu0 0.0
    %1183 = vmatpush1.msra.mxu0 0.0
    %1184 = vmatprep.subr.mxu0 0.0
    %1185 = vmatpush1.msra.mxu0 0.0
    %1186 = vmatprep.subr.mxu0 0.0
    %1187 = vmatpush1.msra.mxu0 0.0
    %1188 = vmatprep.subr.mxu0 0.0
    %1189 = vmatpush1.msra.mxu0 0.0
    %1190 = vmatprep.subr.mxu0 0.0
    %1191 = vmatpush1.msra.mxu0 0.0
    %1192 = vmatprep.subr.mxu0 0.0
    %1193 = vmatpush1.msra.mxu0 0.0
    %1194 = vmatprep.subr.mxu0 0.0
    %1195 = vmatpush1.msra.mxu0 0.0
    %1196 = vmatprep.subr.mxu0 0.0
    %1197 = vmatpush1.msra.mxu0 0.0
    %1198 = vmatprep.subr.mxu0 0.0
    %1199 = vmatpush1.msra.mxu0 0.0
    %1200 = vmatprep.subr.mxu0 0.0
    %1201 = vmatpush1.msra.mxu0 0.0
    %1202 = vmatprep.subr.mxu0 0.0
    %1203 = vmatpush1.msra.mxu0 0.0
    %1204 = vmatprep.subr.mxu0 0.0
    %1205 = vmatpush1.msra.mxu0 0.0
    %1206 = vmatprep.subr.mxu0 0.0
    %1207 = vmatpush1.msra.mxu0 0.0
    %1208 = vmatprep.subr.mxu0 0.0
    %1209 = vmatpush1.msra.mxu0 0.0
    %1210 = vmatprep.subr.mxu0 0.0
    %1211 = vmatpush1.msra.mxu0 0.0
    %1212 = vmatprep.subr.mxu0 0.0
    %1213 = vmatpush1.msra.mxu0 0.0
    %1214 = vmatprep.subr.mxu0 0.0
    %1215 = vmatpush1.msra.mxu0 0.0
    %1216 = vmatprep.mubr.f32.mxu0 0.0
    %1217 = vmatmul.mubr.f32.gmra.mrb[0].mxu0 %v1150
    %v1218 = vpop.f32.mrb[0].mxu0
    %v1219 = vadd.f32 0.0, %v1218
    %v1220 = vpop.f32.mrb[0].mxu0
    %1221 = vdwg.mxu0
    %v1222 = vadd.f32 %v1148, %v1219
    %v1223 = vtanh.pop %v1222
    %v1224 = vmul.f32 %v1223, %v159
    %v1225 = vadd.f32 %v1224, %v160
    %1227 = vrot.lane.b32.xlu0 %v1147, 32
    %v1228 = vpop.permute.xlu0 %1227
    %v1230 = vmul.f32 %v1225, %v1228
    %1232 = vrot.lane.b32.xlu0 %v1225, 64
    %v1233 = vpop.permute.xlu0 %1232
    %v1235 = vmul.f32 %v1225, %v1233
    %1237 = vrot.lane.b32.xlu0 %v1235, 32
    %v1238 = vpop.permute.xlu0 %1237
    %v1240 = vadd.f32 %v1230, %v1238
    %v1241 = vtanh.pop %v1240
    %1243 = vrot.lane.b32.xlu0 %v1241, 64
    %v1244 = vpop.permute.xlu0 %1243
    %v1246 = vmul.f32 %v1225, %v1244
    %1248 = vrot.lane.b32.xlu0 %v1246, 32
    %v1249 = vpop.permute.xlu0 %1248
    %1251 = vst.msk [vmem:[#allocation3] sm:$0x1] %vm355, %v1249
    %v1252 = vld [vmem:[#allocation2 + $0x1] sm:$0x1]
    %v1253 = vsel %vm252, %v1249, 0
    %1255 = vmatprep.subr.mxu0 0.0
    %1256 = vmatpush1.msra.mxu0 %v1056
    %1257 = vmatprep.subr.mxu0 0.0
    %1258 = vmatpush1.msra.mxu0 %v1057
    %1259 = vmatprep.subr.mxu0 0.0
    %1260 = vmatpush1.msra.mxu0 %v1058
    %1261 = vmatprep.subr.mxu0 0.0
    %1262 = vmatpush1.msra.mxu0 %v1059
    %1263 = vmatprep.subr.mxu0 0.0
    %1264 = vmatpush1.msra.mxu0 0.0
    %1265 = vmatprep.subr.mxu0 0.0
    %1266 = vmatpush1.msra.mxu0 0.0
    %1267 = vmatprep.subr.mxu0 0.0
    %1268 = vmatpush1.msra.mxu0 0.0
    %1269 = vmatprep.subr.mxu0 0.0
    %1270 = vmatpush1.msra.mxu0 0.0
    %1271 = vmatprep.subr.mxu0 0.0
    %1272 = vmatpush1.msra.mxu0 0.0
    %1273 = vmatprep.subr.mxu0 0.0
    %1274 = vmatpush1.msra.mxu0 0.0
    %1275 = vmatprep.subr.mxu0 0.0
    %1276 = vmatpush1.msra.mxu0 0.0
    %1277 = vmatprep.subr.mxu0 0.0
    %1278 = vmatpush1.msra.mxu0 0.0
    %1279 = vmatprep.subr.mxu0 0.0
    %1280 = vmatpush1.msra.mxu0 0.0
    %1281 = vmatprep.subr.mxu0 0.0
    %1282 = vmatpush1.msra.mxu0 0.0
    %1283 = vmatprep.subr.mxu0 0.0
    %1284 = vmatpush1.msra.mxu0 0.0
    %1285 = vmatprep.subr.mxu0 0.0
    %1286 = vmatpush1.msra.mxu0 0.0
    %1287 = vmatprep.subr.mxu0 0.0
    %1288 = vmatpush1.msra.mxu0 0.0
    %1289 = vmatprep.subr.mxu0 0.0
    %1290 = vmatpush1.msra.mxu0 0.0
    %1291 = vmatprep.subr.mxu0 0.0
    %1292 = vmatpush1.msra.mxu0 0.0
    %1293 = vmatprep.subr.mxu0 0.0
    %1294 = vmatpush1.msra.mxu0 0.0
    %1295 = vmatprep.subr.mxu0 0.0
    %1296 = vmatpush1.msra.mxu0 0.0
    %1297 = vmatprep.subr.mxu0 0.0
    %1298 = vmatpush1.msra.mxu0 0.0
    %1299 = vmatprep.subr.mxu0 0.0
    %1300 = vmatpush1.msra.mxu0 0.0
    %1301 = vmatprep.subr.mxu0 0.0
    %1302 = vmatpush1.msra.mxu0 0.0
    %1303 = vmatprep.subr.mxu0 0.0
    %1304 = vmatpush1.msra.mxu0 0.0
    %1305 = vmatprep.subr.mxu0 0.0
    %1306 = vmatpush1.msra.mxu0 0.0
    %1307 = vmatprep.subr.mxu0 0.0
    %1308 = vmatpush1.msra.mxu0 0.0
    %1309 = vmatprep.subr.mxu0 0.0
    %1310 = vmatpush1.msra.mxu0 0.0
    %1311 = vmatprep.subr.mxu0 0.0
    %1312 = vmatpush1.msra.mxu0 0.0
    %1313 = vmatprep.subr.mxu0 0.0
    %1314 = vmatpush1.msra.mxu0 0.0
    %1315 = vmatprep.subr.mxu0 0.0
    %1316 = vmatpush1.msra.mxu0 0.0
    %1317 = vmatprep.subr.mxu0 0.0
    %1318 = vmatpush1.msra.mxu0 0.0
    %1319 = vmatprep.mubr.f32.mxu0 0.0
    %1320 = vmatmul.mubr.f32.gmra.mrb[0].mxu0 %v1253
    %v1321 = vpop.f32.mrb[0].mxu0
    %v1322 = vadd.f32 0.0, %v1321
    %v1323 = vpop.f32.mrb[0].mxu0
    %1324 = vdwg.mxu0
    %v1325 = vadd.f32 %v1252, %v1322
    %v1326 = vtanh.pop %v1325
    %v1327 = vmul.f32 %v1326, %v159
    %v1328 = vadd.f32 %v1327, %v160
    %v1329 = vmul.f32 %v1328, %v1240
    %1331 = vrot.lane.b32.xlu0 %v1328, 64
    %v1332 = vpop.permute.xlu0 %1331
    %v1334 = vmul.f32 %v1328, %v1332
    %1336 = vrot.lane.b32.xlu0 %v1334, 32
    %v1337 = vpop.permute.xlu0 %1336
    %v1339 = vadd.f32 %v1329, %v1337
    %v1340 = vtanh.pop %v1339
    %1342 = vrot.lane.b32.xlu0 %v1340, 64
    %v1343 = vpop.permute.xlu0 %1342
    %v1345 = vmul.f32 %v1328, %v1343
    %1347 = vrot.lane.b32.xlu0 %v1345, 32
    %v1348 = vpop.permute.xlu0 %1347
    %1350 = vst.msk [vmem:[#allocation3 + $0x1] sm:$0x1] %vm355, %v1348
    %v1351 = vld [vmem:[#allocation2 + $0x2] sm:$0x1]
    %v1352 = vsel %vm252, %v1348, 0
    %1354 = vmatprep.subr.mxu0 0.0
    %1355 = vmatpush1.msra.mxu0 %v1056
    %1356 = vmatprep.subr.mxu0 0.0
    %1357 = vmatpush1.msra.mxu0 %v1057
    %1358 = vmatprep.subr.mxu0 0.0
    %1359 = vmatpush1.msra.mxu0 %v1058
    %1360 = vmatprep.subr.mxu0 0.0
    %1361 = vmatpush1.msra.mxu0 %v1059
    %1362 = vmatprep.subr.mxu0 0.0
    %1363 = vmatpush1.msra.mxu0 0.0
    %1364 = vmatprep.subr.mxu0 0.0
    %1365 = vmatpush1.msra.mxu0 0.0
    %1366 = vmatprep.subr.mxu0 0.0
    %1367 = vmatpush1.msra.mxu0 0.0
    %1368 = vmatprep.subr.mxu0 0.0
    %1369 = vmatpush1.msra.mxu0 0.0
    %1370 = vmatprep.subr.mxu0 0.0
    %1371 = vmatpush1.msra.mxu0 0.0
    %1372 = vmatprep.subr.mxu0 0.0
    %1373 = vmatpush1.msra.mxu0 0.0
    %1374 = vmatprep.subr.mxu0 0.0
    %1375 = vmatpush1.msra.mxu0 0.0
    %1376 = vmatprep.subr.mxu0 0.0
    %1377 = vmatpush1.msra.mxu0 0.0
    %1378 = vmatprep.subr.mxu0 0.0
    %1379 = vmatpush1.msra.mxu0 0.0
    %1380 = vmatprep.subr.mxu0 0.0
    %1381 = vmatpush1.msra.mxu0 0.0
    %1382 = vmatprep.subr.mxu0 0.0
    %1383 = vmatpush1.msra.mxu0 0.0
    %1384 = vmatprep.subr.mxu0 0.0
    %1385 = vmatpush1.msra.mxu0 0.0
    %1386 = vmatprep.subr.mxu0 0.0
    %1387 = vmatpush1.msra.mxu0 0.0
    %1388 = vmatprep.subr.mxu0 0.0
    %1389 = vmatpush1.msra.mxu0 0.0
    %1390 = vmatprep.subr.mxu0 0.0
    %1391 = vmatpush1.msra.mxu0 0.0
    %1392 = vmatprep.subr.mxu0 0.0
    %1393 = vmatpush1.msra.mxu0 0.0
    %1394 = vmatprep.subr.mxu0 0.0
    %1395 = vmatpush1.msra.mxu0 0.0
    %1396 = vmatprep.subr.mxu0 0.0
    %1397 = vmatpush1.msra.mxu0 0.0
    %1398 = vmatprep.subr.mxu0 0.0
    %1399 = vmatpush1.msra.mxu0 0.0
    %1400 = vmatprep.subr.mxu0 0.0
    %1401 = vmatpush1.msra.mxu0 0.0
    %1402 = vmatprep.subr.mxu0 0.0
    %1403 = vmatpush1.msra.mxu0 0.0
    %1404 = vmatprep.subr.mxu0 0.0
    %1405 = vmatpush1.msra.mxu0 0.0
    %1406 = vmatprep.subr.mxu0 0.0
    %1407 = vmatpush1.msra.mxu0 0.0
    %1408 = vmatprep.subr.mxu0 0.0
    %1409 = vmatpush1.msra.mxu0 0.0
    %1410 = vmatprep.subr.mxu0 0.0
    %1411 = vmatpush1.msra.mxu0 0.0
    %1412 = vmatprep.subr.mxu0 0.0
    %1413 = vmatpush1.msra.mxu0 0.0
    %1414 = vmatprep.subr.mxu0 0.0
    %1415 = vmatpush1.msra.mxu0 0.0
    %1416 = vmatprep.subr.mxu0 0.0
    %1417 = vmatpush1.msra.mxu0 0.0
    %1418 = vmatprep.mubr.f32.mxu0 0.0
    %1419 = vmatmul.mubr.f32.gmra.mrb[0].mxu0 %v1352
    %v1420 = vpop.f32.mrb[0].mxu0
    %v1421 = vadd.f32 0.0, %v1420
    %v1422 = vpop.f32.mrb[0].mxu0
    %1423 = vdwg.mxu0
    %v1424 = vadd.f32 %v1351, %v1421
    %v1425 = vtanh.pop %v1424
    %v1426 = vmul.f32 %v1425, %v159
    %v1427 = vadd.f32 %v1426, %v160
    %v1428 = vmul.f32 %v1427, %v1339
    %1430 = vrot.lane.b32.xlu0 %v1427, 64
    %v1431 = vpop.permute.xlu0 %1430
    %v1433 = vmul.f32 %v1427, %v1431
    %1435 = vrot.lane.b32.xlu0 %v1433, 32
    %v1436 = vpop.permute.xlu0 %1435
    %v1438 = vadd.f32 %v1428, %v1436
    %v1439 = vtanh.pop %v1438
    %1441 = vrot.lane.b32.xlu0 %v1439, 64
    %v1442 = vpop.permute.xlu0 %1441
    %v1444 = vmul.f32 %v1427, %v1442
    %1446 = vrot.lane.b32.xlu0 %v1444, 32
    %v1447 = vpop.permute.xlu0 %1446
    %1449 = vst.msk [vmem:[#allocation3 + $0x2] sm:$0x1] %vm355, %v1447
    %v1450 = vld [vmem:[#allocation2 + $0x3] sm:$0x1]
    %v1451 = vsel %vm252, %v1447, 0
    %1453 = vmatprep.subr.mxu0 0.0
    %1454 = vmatpush1.msra.mxu0 %v1056
    %1455 = vmatprep.subr.mxu0 0.0
    %1456 = vmatpush1.msra.mxu0 %v1057
    %1457 = vmatprep.subr.mxu0 0.0
    %1458 = vmatpush1.msra.mxu0 %v1058
    %1459 = vmatprep.subr.mxu0 0.0
    %1460 = vmatpush1.msra.mxu0 %v1059
    %1461 = vmatprep.subr.mxu0 0.0
    %1462 = vmatpush1.msra.mxu0 0.0
    %1463 = vmatprep.subr.mxu0 0.0
    %1464 = vmatpush1.msra.mxu0 0.0
    %1465 = vmatprep.subr.mxu0 0.0
    %1466 = vmatpush1.msra.mxu0 0.0
    %1467 = vmatprep.subr.mxu0 0.0
    %1468 = vmatpush1.msra.mxu0 0.0
    %1469 = vmatprep.subr.mxu0 0.0
    %1470 = vmatpush1.msra.mxu0 0.0
    %1471 = vmatprep.subr.mxu0 0.0
    %1472 = vmatpush1.msra.mxu0 0.0
    %1473 = vmatprep.subr.mxu0 0.0
    %1474 = vmatpush1.msra.mxu0 0.0
    %1475 = vmatprep.subr.mxu0 0.0
    %1476 = vmatpush1.msra.mxu0 0.0
    %1477 = vmatprep.subr.mxu0 0.0
    %1478 = vmatpush1.msra.mxu0 0.0
    %1479 = vmatprep.subr.mxu0 0.0
    %1480 = vmatpush1.msra.mxu0 0.0
    %1481 = vmatprep.subr.mxu0 0.0
    %1482 = vmatpush1.msra.mxu0 0.0
    %1483 = vmatprep.subr.mxu0 0.0
    %1484 = vmatpush1.msra.mxu0 0.0
    %1485 = vmatprep.subr.mxu0 0.0
    %1486 = vmatpush1.msra.mxu0 0.0
    %1487 = vmatprep.subr.mxu0 0.0
    %1488 = vmatpush1.msra.mxu0 0.0
    %1489 = vmatprep.subr.mxu0 0.0
    %1490 = vmatpush1.msra.mxu0 0.0
    %1491 = vmatprep.subr.mxu0 0.0
    %1492 = vmatpush1.msra.mxu0 0.0
    %1493 = vmatprep.subr.mxu0 0.0
    %1494 = vmatpush1.msra.mxu0 0.0
    %1495 = vmatprep.subr.mxu0 0.0
    %1496 = vmatpush1.msra.mxu0 0.0
    %1497 = vmatprep.subr.mxu0 0.0
    %1498 = vmatpush1.msra.mxu0 0.0
    %1499 = vmatprep.subr.mxu0 0.0
    %1500 = vmatpush1.msra.mxu0 0.0
    %1501 = vmatprep.subr.mxu0 0.0
    %1502 = vmatpush1.msra.mxu0 0.0
    %1503 = vmatprep.subr.mxu0 0.0
    %1504 = vmatpush1.msra.mxu0 0.0
    %1505 = vmatprep.subr.mxu0 0.0
    %1506 = vmatpush1.msra.mxu0 0.0
    %1507 = vmatprep.subr.mxu0 0.0
    %1508 = vmatpush1.msra.mxu0 0.0
    %1509 = vmatprep.subr.mxu0 0.0
    %1510 = vmatpush1.msra.mxu0 0.0
    %1511 = vmatprep.subr.mxu0 0.0
    %1512 = vmatpush1.msra.mxu0 0.0
    %1513 = vmatprep.subr.mxu0 0.0
    %1514 = vmatpush1.msra.mxu0 0.0
    %1515 = vmatprep.subr.mxu0 0.0
    %1516 = vmatpush1.msra.mxu0 0.0
    %1517 = vmatprep.mubr.f32.mxu0 0.0
    %1518 = vmatmul.mubr.f32.gmra.mrb[0].mxu0 %v1451
    %v1519 = vpop.f32.mrb[0].mxu0
    %v1520 = vadd.f32 0.0, %v1519
    %v1521 = vpop.f32.mrb[0].mxu0
    %1522 = vdwg.mxu0
    %v1523 = vadd.f32 %v1450, %v1520
    %v1524 = vtanh.pop %v1523
    %v1525 = vmul.f32 %v1524, %v159
    %v1526 = vadd.f32 %v1525, %v160
    %v1527 = vmul.f32 %v1526, %v1438
    %1529 = vrot.lane.b32.xlu0 %v1526, 64
    %v1530 = vpop.permute.xlu0 %1529
    %v1532 = vmul.f32 %v1526, %v1530
    %1534 = vrot.lane.b32.xlu0 %v1532, 32
    %v1535 = vpop.permute.xlu0 %1534
    %v1537 = vadd.f32 %v1527, %v1535
    %v1538 = vtanh.pop %v1537
    %1540 = vrot.lane.b32.xlu0 %v1538, 64
    %v1541 = vpop.permute.xlu0 %1540
    %v1543 = vmul.f32 %v1526, %v1541
    %1545 = vrot.lane.b32.xlu0 %v1543, 32
    %v1546 = vpop.permute.xlu0 %1545
    %1548 = vst.msk [vmem:[#allocation3 + $0x3] sm:$0x1] %vm355, %v1546
    %v1549 = vld [vmem:[#allocation2 + $0x4] sm:$0x1]
    %v1550 = vsel %vm252, %v1546, 0
    %1552 = vmatprep.subr.mxu0 0.0
    %1553 = vmatpush1.msra.mxu0 %v1056
    %1554 = vmatprep.subr.mxu0 0.0
    %1555 = vmatpush1.msra.mxu0 %v1057
    %1556 = vmatprep.subr.mxu0 0.0
    %1557 = vmatpush1.msra.mxu0 %v1058
    %1558 = vmatprep.subr.mxu0 0.0
    %1559 = vmatpush1.msra.mxu0 %v1059
    %1560 = vmatprep.subr.mxu0 0.0
    %1561 = vmatpush1.msra.mxu0 0.0
    %1562 = vmatprep.subr.mxu0 0.0
    %1563 = vmatpush1.msra.mxu0 0.0
    %1564 = vmatprep.subr.mxu0 0.0
    %1565 = vmatpush1.msra.mxu0 0.0
    %1566 = vmatprep.subr.mxu0 0.0
    %1567 = vmatpush1.msra.mxu0 0.0
    %1568 = vmatprep.subr.mxu0 0.0
    %1569 = vmatpush1.msra.mxu0 0.0
    %1570 = vmatprep.subr.mxu0 0.0
    %1571 = vmatpush1.msra.mxu0 0.0
    %1572 = vmatprep.subr.mxu0 0.0
    %1573 = vmatpush1.msra.mxu0 0.0
    %1574 = vmatprep.subr.mxu0 0.0
    %1575 = vmatpush1.msra.mxu0 0.0
    %1576 = vmatprep.subr.mxu0 0.0
    %1577 = vmatpush1.msra.mxu0 0.0
    %1578 = vmatprep.subr.mxu0 0.0
    %1579 = vmatpush1.msra.mxu0 0.0
    %1580 = vmatprep.subr.mxu0 0.0
    %1581 = vmatpush1.msra.mxu0 0.0
    %1582 = vmatprep.subr.mxu0 0.0
    %1583 = vmatpush1.msra.mxu0 0.0
    %1584 = vmatprep.subr.mxu0 0.0
    %1585 = vmatpush1.msra.mxu0 0.0
    %1586 = vmatprep.subr.mxu0 0.0
    %1587 = vmatpush1.msra.mxu0 0.0
    %1588 = vmatprep.subr.mxu0 0.0
    %1589 = vmatpush1.msra.mxu0 0.0
    %1590 = vmatprep.subr.mxu0 0.0
    %1591 = vmatpush1.msra.mxu0 0.0
    %1592 = vmatprep.subr.mxu0 0.0
    %1593 = vmatpush1.msra.mxu0 0.0
    %1594 = vmatprep.subr.mxu0 0.0
    %1595 = vmatpush1.msra.mxu0 0.0
    %1596 = vmatprep.subr.mxu0 0.0
    %1597 = vmatpush1.msra.mxu0 0.0
    %1598 = vmatprep.subr.mxu0 0.0
    %1599 = vmatpush1.msra.mxu0 0.0
    %1600 = vmatprep.subr.mxu0 0.0
    %1601 = vmatpush1.msra.mxu0 0.0
    %1602 = vmatprep.subr.mxu0 0.0
    %1603 = vmatpush1.msra.mxu0 0.0
    %1604 = vmatprep.subr.mxu0 0.0
    %1605 = vmatpush1.msra.mxu0 0.0
    %1606 = vmatprep.subr.mxu0 0.0
    %1607 = vmatpush1.msra.mxu0 0.0
    %1608 = vmatprep.subr.mxu0 0.0
    %1609 = vmatpush1.msra.mxu0 0.0
    %1610 = vmatprep.subr.mxu0 0.0
    %1611 = vmatpush1.msra.mxu0 0.0
    %1612 = vmatprep.subr.mxu0 0.0
    %1613 = vmatpush1.msra.mxu0 0.0
    %1614 = vmatprep.subr.mxu0 0.0
    %1615 = vmatpush1.msra.mxu0 0.0
    %1616 = vmatprep.mubr.f32.mxu0 0.0
    %1617 = vmatmul.mubr.f32.gmra.mrb[0].mxu0 %v1550
    %v1618 = vpop.f32.mrb[0].mxu0
    %v1619 = vadd.f32 0.0, %v1618
    %v1620 = vpop.f32.mrb[0].mxu0
    %1621 = vdwg.mxu0
    %v1622 = vadd.f32 %v1549, %v1619
    %v1623 = vtanh.pop %v1622
    %v1624 = vmul.f32 %v1623, %v159
    %v1625 = vadd.f32 %v1624, %v160
    %v1626 = vmul.f32 %v1625, %v1537
    %1628 = vrot.lane.b32.xlu0 %v1625, 64
    %v1629 = vpop.permute.xlu0 %1628
    %v1631 = vmul.f32 %v1625, %v1629
    %1633 = vrot.lane.b32.xlu0 %v1631, 32
    %v1634 = vpop.permute.xlu0 %1633
    %v1636 = vadd.f32 %v1626, %v1634
    %v1637 = vtanh.pop %v1636
    %1639 = vrot.lane.b32.xlu0 %v1637, 64
    %v1640 = vpop.permute.xlu0 %1639
    %v1642 = vmul.f32 %v1625, %v1640
    %1644 = vrot.lane.b32.xlu0 %v1642, 32
    %v1645 = vpop.permute.xlu0 %1644
    %1647 = vst.msk [vmem:[#allocation3 + $0x4] sm:$0x1] %vm355, %v1645
    %v1648 = vld [vmem:[#allocation2 + $0x5] sm:$0x1]
    %v1649 = vsel %vm252, %v1645, 0
    %1651 = vmatprep.subr.mxu0 0.0
    %1652 = vmatpush1.msra.mxu0 %v1056
    %1653 = vmatprep.subr.mxu0 0.0
    %1654 = vmatpush1.msra.mxu0 %v1057
    %1655 = vmatprep.subr.mxu0 0.0
    %1656 = vmatpush1.msra.mxu0 %v1058
    %1657 = vmatprep.subr.mxu0 0.0
    %1658 = vmatpush1.msra.mxu0 %v1059
    %1659 = vmatprep.subr.mxu0 0.0
    %1660 = vmatpush1.msra.mxu0 0.0
    %1661 = vmatprep.subr.mxu0 0.0
    %1662 = vmatpush1.msra.mxu0 0.0
    %1663 = vmatprep.subr.mxu0 0.0
    %1664 = vmatpush1.msra.mxu0 0.0
    %1665 = vmatprep.subr.mxu0 0.0
    %1666 = vmatpush1.msra.mxu0 0.0
    %1667 = vmatprep.subr.mxu0 0.0
    %1668 = vmatpush1.msra.mxu0 0.0
    %1669 = vmatprep.subr.mxu0 0.0
    %1670 = vmatpush1.msra.mxu0 0.0
    %1671 = vmatprep.subr.mxu0 0.0
    %1672 = vmatpush1.msra.mxu0 0.0
    %1673 = vmatprep.subr.mxu0 0.0
    %1674 = vmatpush1.msra.mxu0 0.0
    %1675 = vmatprep.subr.mxu0 0.0
    %1676 = vmatpush1.msra.mxu0 0.0
    %1677 = vmatprep.subr.mxu0 0.0
    %1678 = vmatpush1.msra.mxu0 0.0
    %1679 = vmatprep.subr.mxu0 0.0
    %1680 = vmatpush1.msra.mxu0 0.0
    %1681 = vmatprep.subr.mxu0 0.0
    %1682 = vmatpush1.msra.mxu0 0.0
    %1683 = vmatprep.subr.mxu0 0.0
    %1684 = vmatpush1.msra.mxu0 0.0
    %1685 = vmatprep.subr.mxu0 0.0
    %1686 = vmatpush1.msra.mxu0 0.0
    %1687 = vmatprep.subr.mxu0 0.0
    %1688 = vmatpush1.msra.mxu0 0.0
    %1689 = vmatprep.subr.mxu0 0.0
    %1690 = vmatpush1.msra.mxu0 0.0
    %1691 = vmatprep.subr.mxu0 0.0
    %1692 = vmatpush1.msra.mxu0 0.0
    %1693 = vmatprep.subr.mxu0 0.0
    %1694 = vmatpush1.msra.mxu0 0.0
    %1695 = vmatprep.subr.mxu0 0.0
    %1696 = vmatpush1.msra.mxu0 0.0
    %1697 = vmatprep.subr.mxu0 0.0
    %1698 = vmatpush1.msra.mxu0 0.0
    %1699 = vmatprep.subr.mxu0 0.0
    %1700 = vmatpush1.msra.mxu0 0.0
    %1701 = vmatprep.subr.mxu0 0.0
    %1702 = vmatpush1.msra.mxu0 0.0
    %1703 = vmatprep.subr.mxu0 0.0
    %1704 = vmatpush1.msra.mxu0 0.0
    %1705 = vmatprep.subr.mxu0 0.0
    %1706 = vmatpush1.msra.mxu0 0.0
    %1707 = vmatprep.subr.mxu0 0.0
    %1708 = vmatpush1.msra.mxu0 0.0
    %1709 = vmatprep.subr.mxu0 0.0
    %1710 = vmatpush1.msra.mxu0 0.0
    %1711 = vmatprep.subr.mxu0 0.0
    %1712 = vmatpush1.msra.mxu0 0.0
    %1713 = vmatprep.subr.mxu0 0.0
    %1714 = vmatpush1.msra.mxu0 0.0
    %1715 = vmatprep.mubr.f32.mxu0 0.0
    %1716 = vmatmul.mubr.f32.gmra.mrb[0].mxu0 %v1649
    %v1717 = vpop.f32.mrb[0].mxu0
    %v1718 = vadd.f32 0.0, %v1717
    %v1719 = vpop.f32.mrb[0].mxu0
    %1720 = vdwg.mxu0
    %v1721 = vadd.f32 %v1648, %v1718
    %v1722 = vtanh.pop %v1721
    %v1723 = vmul.f32 %v1722, %v159
    %v1724 = vadd.f32 %v1723, %v160
    %v1725 = vmul.f32 %v1724, %v1636
    %1727 = vrot.lane.b32.xlu0 %v1724, 64
    %v1728 = vpop.permute.xlu0 %1727
    %v1730 = vmul.f32 %v1724, %v1728
    %1732 = vrot.lane.b32.xlu0 %v1730, 32
    %v1733 = vpop.permute.xlu0 %1732
    %v1735 = vadd.f32 %v1725, %v1733
    %v1736 = vtanh.pop %v1735
    %1738 = vrot.lane.b32.xlu0 %v1736, 64
    %v1739 = vpop.permute.xlu0 %1738
    %v1741 = vmul.f32 %v1724, %v1739
    %1743 = vrot.lane.b32.xlu0 %v1741, 32
    %v1744 = vpop.permute.xlu0 %1743
    %1746 = vst.msk [vmem:[#allocation3 + $0x5] sm:$0x1] %vm355, %v1744
    %v1747 = vld [vmem:[#allocation2 + $0x6] sm:$0x1]
    %v1748 = vsel %vm252, %v1744, 0
    %1750 = vmatprep.subr.mxu0 0.0
    %1751 = vmatpush1.msra.mxu0 %v1056
    %1752 = vmatprep.subr.mxu0 0.0
    %1753 = vmatpush1.msra.mxu0 %v1057
    %1754 = vmatprep.subr.mxu0 0.0
    %1755 = vmatpush1.msra.mxu0 %v1058
    %1756 = vmatprep.subr.mxu0 0.0
    %1757 = vmatpush1.msra.mxu0 %v1059
    %1758 = vmatprep.subr.mxu0 0.0
    %1759 = vmatpush1.msra.mxu0 0.0
    %1760 = vmatprep.subr.mxu0 0.0
    %1761 = vmatpush1.msra.mxu0 0.0
    %1762 = vmatprep.subr.mxu0 0.0
    %1763 = vmatpush1.msra.mxu0 0.0
    %1764 = vmatprep.subr.mxu0 0.0
    %1765 = vmatpush1.msra.mxu0 0.0
    %1766 = vmatprep.subr.mxu0 0.0
    %1767 = vmatpush1.msra.mxu0 0.0
    %1768 = vmatprep.subr.mxu0 0.0
    %1769 = vmatpush1.msra.mxu0 0.0
    %1770 = vmatprep.subr.mxu0 0.0
    %1771 = vmatpush1.msra.mxu0 0.0
    %1772 = vmatprep.subr.mxu0 0.0
    %1773 = vmatpush1.msra.mxu0 0.0
    %1774 = vmatprep.subr.mxu0 0.0
    %1775 = vmatpush1.msra.mxu0 0.0
    %1776 = vmatprep.subr.mxu0 0.0
    %1777 = vmatpush1.msra.mxu0 0.0
    %1778 = vmatprep.subr.mxu0 0.0
    %1779 = vmatpush1.msra.mxu0 0.0
    %1780 = vmatprep.subr.mxu0 0.0
    %1781 = vmatpush1.msra.mxu0 0.0
    %1782 = vmatprep.subr.mxu0 0.0
    %1783 = vmatpush1.msra.mxu0 0.0
    %1784 = vmatprep.subr.mxu0 0.0
    %1785 = vmatpush1.msra.mxu0 0.0
    %1786 = vmatprep.subr.mxu0 0.0
    %1787 = vmatpush1.msra.mxu0 0.0
    %1788 = vmatprep.subr.mxu0 0.0
    %1789 = vmatpush1.msra.mxu0 0.0
    %1790 = vmatprep.subr.mxu0 0.0
    %1791 = vmatpush1.msra.mxu0 0.0
    %1792 = vmatprep.subr.mxu0 0.0
    %1793 = vmatpush1.msra.mxu0 0.0
    %1794 = vmatprep.subr.mxu0 0.0
    %1795 = vmatpush1.msra.mxu0 0.0
    %1796 = vmatprep.subr.mxu0 0.0
    %1797 = vmatpush1.msra.mxu0 0.0
    %1798 = vmatprep.subr.mxu0 0.0
    %1799 = vmatpush1.msra.mxu0 0.0
    %1800 = vmatprep.subr.mxu0 0.0
    %1801 = vmatpush1.msra.mxu0 0.0
    %1802 = vmatprep.subr.mxu0 0.0
    %1803 = vmatpush1.msra.mxu0 0.0
    %1804 = vmatprep.subr.mxu0 0.0
    %1805 = vmatpush1.msra.mxu0 0.0
    %1806 = vmatprep.subr.mxu0 0.0
    %1807 = vmatpush1.msra.mxu0 0.0
    %1808 = vmatprep.subr.mxu0 0.0
    %1809 = vmatpush1.msra.mxu0 0.0
    %1810 = vmatprep.subr.mxu0 0.0
    %1811 = vmatpush1.msra.mxu0 0.0
    %1812 = vmatprep.subr.mxu0 0.0
    %1813 = vmatpush1.msra.mxu0 0.0
    %1814 = vmatprep.mubr.f32.mxu0 0.0
    %1815 = vmatmul.mubr.f32.gmra.mrb[0].mxu0 %v1748
    %v1816 = vpop.f32.mrb[0].mxu0
    %v1817 = vadd.f32 0.0, %v1816
    %v1818 = vpop.f32.mrb[0].mxu0
    %1819 = vdwg.mxu0
    %v1820 = vadd.f32 %v1747, %v1817
    %v1821 = vtanh.pop %v1820
    %v1822 = vmul.f32 %v1821, %v159
    %v1823 = vadd.f32 %v1822, %v160
    %v1824 = vmul.f32 %v1823, %v1735
    %1826 = vrot.lane.b32.xlu0 %v1823, 64
    %v1827 = vpop.permute.xlu0 %1826
    %v1829 = vmul.f32 %v1823, %v1827
    %1831 = vrot.lane.b32.xlu0 %v1829, 32
    %v1832 = vpop.permute.xlu0 %1831
    %v1834 = vadd.f32 %v1824, %v1832
    %v1835 = vtanh.pop %v1834
    %1837 = vrot.lane.b32.xlu0 %v1835, 64
    %v1838 = vpop.permute.xlu0 %1837
    %v1840 = vmul.f32 %v1823, %v1838
    %1842 = vrot.lane.b32.xlu0 %v1840, 32
    %v1843 = vpop.permute.xlu0 %1842
    %1845 = vst.msk [vmem:[#allocation3 + $0x6] sm:$0x1] %vm355, %v1843
    %v1846 = vld [vmem:[#allocation2 + $0x7] sm:$0x1]
    %v1847 = vsel %vm252, %v1843, 0
    %1849 = vmatprep.subr.mxu0 0.0
    %1850 = vmatpush1.msra.mxu0 %v1056
    %1851 = vmatprep.subr.mxu0 0.0
    %1852 = vmatpush1.msra.mxu0 %v1057
    %1853 = vmatprep.subr.mxu0 0.0
    %1854 = vmatpush1.msra.mxu0 %v1058
    %1855 = vmatprep.subr.mxu0 0.0
    %1856 = vmatpush1.msra.mxu0 %v1059
    %1857 = vmatprep.subr.mxu0 0.0
    %1858 = vmatpush1.msra.mxu0 0.0
    %1859 = vmatprep.subr.mxu0 0.0
    %1860 = vmatpush1.msra.mxu0 0.0
    %1861 = vmatprep.subr.mxu0 0.0
    %1862 = vmatpush1.msra.mxu0 0.0
    %1863 = vmatprep.subr.mxu0 0.0
    %1864 = vmatpush1.msra.mxu0 0.0
    %1865 = vmatprep.subr.mxu0 0.0
    %1866 = vmatpush1.msra.mxu0 0.0
    %1867 = vmatprep.subr.mxu0 0.0
    %1868 = vmatpush1.msra.mxu0 0.0
    %1869 = vmatprep.subr.mxu0 0.0
    %1870 = vmatpush1.msra.mxu0 0.0
    %1871 = vmatprep.subr.mxu0 0.0
    %1872 = vmatpush1.msra.mxu0 0.0
    %1873 = vmatprep.subr.mxu0 0.0
    %1874 = vmatpush1.msra.mxu0 0.0
    %1875 = vmatprep.subr.mxu0 0.0
    %1876 = vmatpush1.msra.mxu0 0.0
    %1877 = vmatprep.subr.mxu0 0.0
    %1878 = vmatpush1.msra.mxu0 0.0
    %1879 = vmatprep.subr.mxu0 0.0
    %1880 = vmatpush1.msra.mxu0 0.0
    %1881 = vmatprep.subr.mxu0 0.0
    %1882 = vmatpush1.msra.mxu0 0.0
    %1883 = vmatprep.subr.mxu0 0.0
    %1884 = vmatpush1.msra.mxu0 0.0
    %1885 = vmatprep.subr.mxu0 0.0
    %1886 = vmatpush1.msra.mxu0 0.0
    %1887 = vmatprep.subr.mxu0 0.0
    %1888 = vmatpush1.msra.mxu0 0.0
    %1889 = vmatprep.subr.mxu0 0.0
    %1890 = vmatpush1.msra.mxu0 0.0
    %1891 = vmatprep.subr.mxu0 0.0
    %1892 = vmatpush1.msra.mxu0 0.0
    %1893 = vmatprep.subr.mxu0 0.0
    %1894 = vmatpush1.msra.mxu0 0.0
    %1895 = vmatprep.subr.mxu0 0.0
    %1896 = vmatpush1.msra.mxu0 0.0
    %1897 = vmatprep.subr.mxu0 0.0
    %1898 = vmatpush1.msra.mxu0 0.0
    %1899 = vmatprep.subr.mxu0 0.0
    %1900 = vmatpush1.msra.mxu0 0.0
    %1901 = vmatprep.subr.mxu0 0.0
    %1902 = vmatpush1.msra.mxu0 0.0
    %1903 = vmatprep.subr.mxu0 0.0
    %1904 = vmatpush1.msra.mxu0 0.0
    %1905 = vmatprep.subr.mxu0 0.0
    %1906 = vmatpush1.msra.mxu0 0.0
    %1907 = vmatprep.subr.mxu0 0.0
    %1908 = vmatpush1.msra.mxu0 0.0
    %1909 = vmatprep.subr.mxu0 0.0
    %1910 = vmatpush1.msra.mxu0 0.0
    %1911 = vmatprep.subr.mxu0 0.0
    %1912 = vmatpush1.msra.mxu0 0.0
    %1913 = vmatprep.mubr.f32.mxu0 0.0
    %1914 = vmatmul.mubr.f32.gmra.mrb[0].mxu0 %v1847
    %v1915 = vpop.f32.mrb[0].mxu0
    %v1916 = vadd.f32 0.0, %v1915
    %v1917 = vpop.f32.mrb[0].mxu0
    %1918 = vdwg.mxu0
    %v1919 = vadd.f32 %v1846, %v1916
    %v1920 = vtanh.pop %v1919
    %v1921 = vmul.f32 %v1920, %v159
    %v1922 = vadd.f32 %v1921, %v160
    %v1923 = vmul.f32 %v1922, %v1834
    %1925 = vrot.lane.b32.xlu0 %v1922, 64
    %v1926 = vpop.permute.xlu0 %1925
    %v1928 = vmul.f32 %v1922, %v1926
    %1930 = vrot.lane.b32.xlu0 %v1928, 32
    %v1931 = vpop.permute.xlu0 %1930
    %v1933 = vadd.f32 %v1923, %v1931
    %v1934 = vtanh.pop %v1933
    %1936 = vrot.lane.b32.xlu0 %v1934, 64
    %v1937 = vpop.permute.xlu0 %1936
    %v1939 = vmul.f32 %v1922, %v1937
    %1941 = vrot.lane.b32.xlu0 %v1939, 32
    %v1942 = vpop.permute.xlu0 %1941
    %1944 = vst.msk [vmem:[#allocation3 + $0x7] sm:$0x1] %vm355, %v1942
    %1945 = vst.msk [vmem:[#allocation20 + $0x1] sm:$0x1] %vm355, %v1942
    %1947 = vrot.lane.b32.xlu0 %v1933, 96
    %v1948 = vpop.permute.xlu0 %1947
    %1950 = vst.msk [vmem:[#allocation22 + $0x1] sm:$0x1] %vm355, %v1948
    %v1951 = vld [vmem:[#allocation3] sm:$0xff]
    %v1952 = vld [vmem:[#allocation18] sm:$0xff]
    %v1953 = vld [vmem:[#allocation18 + $0x8] sm:$0xff]
    %v1954 = vld [vmem:[#allocation18 + $0x10] sm:$0xff]
    %v1955 = vld [vmem:[#allocation18 + $0x18] sm:$0xff]
    %v1956 = vld [vmem:[%s12] sm:$0x1]
    %v1958 = vlaneseq
    %v1959 = vshrl.u32 %v1958, 7
    %v1960 = vsub.s32 0, %v1959
    %v1961 = vrot.slane %v1956, %v1960
    %v1964 = vsel %vm252, %v1951, 0
    %1966 = vmatprep.subr.mxu0 0.0
    %1967 = vmatpush1.msra.mxu0 %v1952
    %1968 = vmatprep.subr.mxu0 0.0
    %1969 = vmatpush1.msra.mxu0 %v1953
    %1970 = vmatprep.subr.mxu0 0.0
    %1971 = vmatpush1.msra.mxu0 %v1954
    %1972 = vmatprep.subr.mxu0 0.0
    %1973 = vmatpush1.msra.mxu0 %v1955
    %1974 = vmatprep.subr.mxu0 0.0
    %1975 = vmatpush1.msra.mxu0 0.0
    %1976 = vmatprep.subr.mxu0 0.0
    %1977 = vmatpush1.msra.mxu0 0.0
    %1978 = vmatprep.subr.mxu0 0.0
    %1979 = vmatpush1.msra.mxu0 0.0
    %1980 = vmatprep.subr.mxu0 0.0
    %1981 = vmatpush1.msra.mxu0 0.0
    %1982 = vmatprep.subr.mxu0 0.0
    %1983 = vmatpush1.msra.mxu0 0.0
    %1984 = vmatprep.subr.mxu0 0.0
    %1985 = vmatpush1.msra.mxu0 0.0
    %1986 = vmatprep.subr.mxu0 0.0
    %1987 = vmatpush1.msra.mxu0 0.0
    %1988 = vmatprep.subr.mxu0 0.0
    %1989 = vmatpush1.msra.mxu0 0.0
    %1990 = vmatprep.subr.mxu0 0.0
    %1991 = vmatpush1.msra.mxu0 0.0
    %1992 = vmatprep.subr.mxu0 0.0
    %1993 = vmatpush1.msra.mxu0 0.0
    %1994 = vmatprep.subr.mxu0 0.0
    %1995 = vmatpush1.msra.mxu0 0.0
    %1996 = vmatprep.subr.mxu0 0.0
    %1997 = vmatpush1.msra.mxu0 0.0
    %1998 = vmatprep.subr.mxu0 0.0
    %1999 = vmatpush1.msra.mxu0 0.0
    %2000 = vmatprep.subr.mxu0 0.0
    %2001 = vmatpush1.msra.mxu0 0.0
    %2002 = vmatprep.subr.mxu0 0.0
    %2003 = vmatpush1.msra.mxu0 0.0
    %2004 = vmatprep.subr.mxu0 0.0
    %2005 = vmatpush1.msra.mxu0 0.0
    %2006 = vmatprep.subr.mxu0 0.0
    %2007 = vmatpush1.msra.mxu0 0.0
    %2008 = vmatprep.subr.mxu0 0.0
    %2009 = vmatpush1.msra.mxu0 0.0
    %2010 = vmatprep.subr.mxu0 0.0
    %2011 = vmatpush1.msra.mxu0 0.0
    %2012 = vmatprep.subr.mxu0 0.0
    %2013 = vmatpush1.msra.mxu0 0.0
    %2014 = vmatprep.subr.mxu0 0.0
    %2015 = vmatpush1.msra.mxu0 0.0
    %2016 = vmatprep.subr.mxu0 0.0
    %2017 = vmatpush1.msra.mxu0 0.0
    %2018 = vmatprep.subr.mxu0 0.0
    %2019 = vmatpush1.msra.mxu0 0.0
    %2020 = vmatprep.subr.mxu0 0.0
    %2021 = vmatpush1.msra.mxu0 0.0
    %2022 = vmatprep.subr.mxu0 0.0
    %2023 = vmatpush1.msra.mxu0 0.0
    %2024 = vmatprep.subr.mxu0 0.0
    %2025 = vmatpush1.msra.mxu0 0.0
    %2026 = vmatprep.subr.mxu0 0.0
    %2027 = vmatpush1.msra.mxu0 0.0
    %2028 = vmatprep.subr.mxu0 0.0
    %2029 = vmatpush1.msra.mxu0 0.0
    %2030 = vmatprep.mubr.f32.mxu0 0.0
    %2031 = vmatmul.mubr.f32.gmra.mrb[0].mxu0 %v1964
    %v2032 = vpop.f32.mrb[0].mxu0
    %v2033 = vadd.f32 %v1961, %v2032
    %v2034 = vpop.f32.mrb[0].mxu0
    %2035 = vdwg.mxu0
    %2036 = vst [vmem:[#allocation19] sm:$0xff] %v2033
    // Predicated region
    $region90: #{tpu_custom_call.1} parent=1 // pred_check
      _
    $region91: #{tpu_custom_call.1} parent=1 // pred_check_branch
      %2038 = sbr.rel (0) target = $region93
    $region92: #{tpu_custom_call.1} parent=1 // pred_region
      %s2040 = ssub.s32 128, 128
      %2041 = vsyncadd [#allocation6], %s2040
      %s2043 = sshll.u32 [#allocation19], 4
      %s2044 = int_to_ptr.vmem [resolvable:$true] %s2043
      %2046 = dma.vmem_to_hbm [thread:$0]  %s2044, 128, %s13, [#allocation6]
    $region93: #{tpu_custom_call.1} parent=1 // pred_fallthru
      _
    // Predicated region
    $region94: #{tpu_custom_call.1} parent=1 // pred_check
      _
    $region95: #{tpu_custom_call.1} parent=1 // pred_check_branch
      %2048 = sbr.rel (0) target = $region97
    $region96: #{tpu_custom_call.1} parent=1 // pred_region
      %s2050 = ssub.s32 32, 32
      %2051 = vsyncadd [#allocation21], %s2050
      %s2053 = sshll.u32 [#allocation20], 4
      %s2054 = int_to_ptr.vmem [resolvable:$true] %s2053
      %2056 = dma.vmem_to_hbm [thread:$0]  %s2054, 32, %s14, [#allocation21]
    $region97: #{tpu_custom_call.1} parent=1 // pred_fallthru
      _
    // Predicated region
    $region98: #{tpu_custom_call.1} parent=1 // pred_check
      _
    $region99: #{tpu_custom_call.1} parent=1 // pred_check_branch
      %2058 = sbr.rel (0) target = $region101
    $region100: #{tpu_custom_call.1} parent=1 // pred_region
      %s2060 = ssub.s32 32, 32
      %2061 = vsyncadd [#allocation21], %s2060
      %s2063 = sshll.u32 [#allocation22], 4
      %s2064 = int_to_ptr.vmem [resolvable:$true] %s2063
      %2066 = dma.vmem_to_hbm [thread:$0]  %s2064, 32, %s15, [#allocation21]
    $region101: #{tpu_custom_call.1} parent=1 // pred_fallthru
      _
    // Predicated region
    $region102: #{tpu_custom_call.1} parent=1 // pred_check
      _
    $region103: #{tpu_custom_call.1} parent=1 // pred_check_branch
      %2068 = sbr.rel (0) target = $region105
    $region104: #{tpu_custom_call.1} parent=1 // pred_region
      %2069 = dma.done [#allocation6], 128
    $region105: #{tpu_custom_call.1} parent=1 // pred_fallthru
      _
    // Predicated region
    $region106: #{tpu_custom_call.1} parent=1 // pred_check
      _
    $region107: #{tpu_custom_call.1} parent=1 // pred_check_branch
      %2071 = sbr.rel (0) target = $region109
    $region108: #{tpu_custom_call.1} parent=1 // pred_region
      %2072 = dma.done [#allocation21], 32
    $region109: #{tpu_custom_call.1} parent=1 // pred_fallthru
      _
    // Predicated region
    $region110: #{tpu_custom_call.1} parent=1 // pred_check
      _
    $region111: #{tpu_custom_call.1} parent=1 // pred_check_branch
      %2074 = sbr.rel (0) target = $region113
    $region112: #{tpu_custom_call.1} parent=1 // pred_region
      %2075 = dma.done [#allocation21], 32
    $region113: #{tpu_custom_call.1} parent=1 // pred_fallthru
      _
    %2076 = vsyncpa [#allocation5], 1
    %2077 = vsyncpa [#allocation8], 1
    %2078 = vsyncpa [#allocation11], 1
    %2079 = vsyncpa [#allocation14], 1
    %2080 = vsyncpa [#allocation17], 1
    %2081 = vsyncpa [#allocation6], 1
    %2082 = vsyncpa [#allocation21], 1

</llo_original>
